<compile_context>
chip_gen: v6e
topology: v6e:2x2x1
jax: 0.10.0
libtpu: 0.0.40
codegen_flags: <defaults>
</compile_context>

<pallas_src>
import jax
import jax.numpy as jnp
from jax.experimental import pallas as pl
from jax.experimental.pallas import tpu as pltpu


def _round_up(x, m):
    return (x + m - 1) // m * m


# ---------------------------------------------------------------------------
# Pallas kernel: fused gate/value matmuls + SiLU + elementwise product + down.
# ---------------------------------------------------------------------------
def _ffn_kernel(x_ref, w1_ref, b1_ref, w2_ref, b2_ref, wd_ref, bd_ref, o_ref):
    x = x_ref[...]                                                    # (bm, Hp) bf16

    # gate = SiLU(x @ W1^T + b1)  -- bf16 MXU inputs, f32 accumulation
    g = jnp.dot(x, w1_ref[...], preferred_element_type=jnp.float32) + b1_ref[...]
    gate = g * jax.nn.sigmoid(g)                                      # f32 (VPU/EUP)

    # value = x @ W2^T + b2
    v = jnp.dot(x, w2_ref[...], preferred_element_type=jnp.float32) + b2_ref[...]

    # dropout = identity (eval mode); cast the product to bf16 only for the
    # down-projection so the elementwise math stays f32.
    h = (gate * v).astype(jnp.bfloat16)

    out = jnp.dot(h, wd_ref[...], preferred_element_type=jnp.float32) + bd_ref[...]
    o_ref[...] = out.astype(o_ref.dtype)


def _pick_block_m(m_rows):
    # bf16 x tiles: keep the sublane dim a multiple of 16 (packed rows); aim
    # for >= 2 grid steps so the x/out DMAs pipeline against the matmuls.
    mr = _round_up(m_rows, 16)
    if mr >= 1024:
        return 512
    if mr >= 32:
        return max(16, _round_up(mr // 2, 16))
    return mr


def _build_specs(block_m, Hp, Ip, single_buffer_weights):
    def wspec(shape):
        if single_buffer_weights:
            # Grid-invariant blocks: one VMEM buffer is enough (never re-fetched).
            return pl.BlockSpec(shape, lambda i: (0, 0),
                                pipeline_mode=pl.Buffered(1))
        return pl.BlockSpec(shape, lambda i: (0, 0))

    in_specs = [
        pl.BlockSpec((block_m, Hp), lambda i: (i, 0)),   # x tile (pipelined)
        wspec((Hp, Ip)),                                 # W1^T (full, resident)
        wspec((1, Ip)),                                  # b1
        wspec((Hp, Ip)),                                 # W2^T
        wspec((1, Ip)),                                  # b2
        wspec((Ip, Hp)),                                 # Wdown^T
        wspec((1, Hp)),                                  # bd
    ]
    out_spec = pl.BlockSpec((block_m, Hp), lambda i: (i, 0))
    return in_specs, out_spec


def feedforward_pallas(x2d, w1t, b1, w2t, b2, wdt, bd, *, block_m=None):
    """x2d: (M, H) f32.  Weights pre-transposed/zero-padded bf16, biases f32 (1, N)."""
    M, H = x2d.shape
    Hp, Ip = w1t.shape
    assert wdt.shape == (Ip, Hp) and b1.shape == (1, Ip) and bd.shape == (1, Hp)

    if block_m is None:
        block_m = _pick_block_m(M)
    Mp = _round_up(M, block_m)
    grid = (Mp // block_m,)

    # Zero-pad rows to the tile size and features to the lane-padded width.
    x_pad = jnp.pad(x2d.astype(jnp.bfloat16), ((0, Mp - M), (0, Hp - H)))

    # Advisory cost hint (3 matmuls of Mp x Hp x Ip + SiLU transcendentals).
    cost = pl.CostEstimate(
        flops=6 * Mp * Hp * Ip,
        transcendentals=Mp * Ip,
        bytes_accessed=(Mp * Hp * 2 + Mp * Hp * 4            # x in (bf16) + out (f32)
                        + 3 * Hp * Ip * 2                    # three bf16 weights
                        + (2 * Ip + Hp) * 4),                # f32 biases
    )

    def run(single_buffer_weights):
        in_specs, out_spec = _build_specs(block_m, Hp, Ip, single_buffer_weights)
        return pl.pallas_call(
            _ffn_kernel,
            out_shape=jax.ShapeDtypeStruct((Mp, Hp), jnp.float32),
            grid_spec=pltpu.PrefetchScalarGridSpec(
                num_scalar_prefetch=0,
                grid=grid,
                in_specs=in_specs,
                out_specs=out_spec,
            ),
            compiler_params=pltpu.CompilerParams(
                dimension_semantics=("parallel",),
                vmem_limit_bytes=64 * 1024 * 1024,
            ),
            cost_estimate=cost,
        )(x_pad, w1t, b1, w2t, b2, wdt, bd)

    try:
        out_pad = run(single_buffer_weights=True)
    except Exception:
        # Fallback if this JAX build rejects pipeline_mode=pl.Buffered(1).
        out_pad = run(single_buffer_weights=False)

    # TODO(synk): for FFN sizes where the resident bf16 weights exceed VMEM
    # (e.g. v7x 64 MiB), add a second "arbitrary" grid axis over the
    # intermediate dim with an f32 accumulator scratch (pl.when init on the
    # first step, writeback on the last).
    return out_pad[:M, :H]


# ---------------------------------------------------------------------------
# Parameter setup (plain-JAX glue): deterministic init + spectral normalization.
# ---------------------------------------------------------------------------
def _spectral_normalize(w):
    # sigma_max via SVD (the value PyTorch's power iteration converges to).
    return w / jnp.linalg.norm(w, ord=2)


def make_params(key, hidden_size, intermediate_size, *, lane=128):
    k1, k2, k3, kb1, kb2, kb3 = jax.random.split(key, 6)

    def linear_init(kw, kb, fan_in, fan_out):
        # PyTorch nn.Linear default: U(-1/sqrt(fan_in), 1/sqrt(fan_in))
        bound = 1.0 / jnp.sqrt(fan_in)
        w = jax.random.uniform(kw, (fan_out, fan_in), jnp.float32, -bound, bound)
        b = jax.random.uniform(kb, (fan_out,), jnp.float32, -bound, bound)
        return w, b

    w1, b1 = linear_init(k1, kb1, hidden_size, intermediate_size)
    w2, b2 = linear_init(k2, kb2, hidden_size, intermediate_size)
    wd, bd = linear_init(k3, kb3, intermediate_size, hidden_size)
    w1, w2, wd = map(_spectral_normalize, (w1, w2, wd))

    Hp = _round_up(hidden_size, lane)
    Ip = _round_up(intermediate_size, lane)

    def pad_t(w, rows, cols):
        wt = w.T                                           # (fan_in, fan_out)
        return jnp.pad(wt, ((0, rows - wt.shape[0]), (0, cols - wt.shape[1])))

    def pad_b(b, cols):
        return jnp.pad(b, (0, cols - b.shape[0])).reshape(1, -1)

    # Kernel params: bf16 weights (pre-transposed, zero-padded to lane-dense
    # 128-multiples), f32 biases.  Zero padding keeps padded lanes exactly zero
    # so they never contaminate the down-projection.
    kernel_params = dict(
        w1t=pad_t(w1, Hp, Ip).astype(jnp.bfloat16), b1=pad_b(b1, Ip),
        w2t=pad_t(w2, Hp, Ip).astype(jnp.bfloat16), b2=pad_b(b2, Ip),
        wdt=pad_t(wd, Ip, Hp).astype(jnp.bfloat16), bd=pad_b(bd, Hp),
        hidden_size=hidden_size,
    )
    # Full-precision, unpadded copies for the pure-JAX reference.
    ref_params = dict(
        w1t=w1.T, b1=b1.reshape(1, -1),
        w2t=w2.T, b2=b2.reshape(1, -1),
        wdt=wd.T, bd=bd.reshape(1, -1),
    )
    return kernel_params, ref_params


def feedforward(x, params, *, block_m=None):
    """x: (..., hidden). Applies the SwiGLU FFN over the last axis."""
    H = params["hidden_size"]
    x2d = x.reshape(-1, H)
    out = feedforward_pallas(
        x2d,
        params["w1t"], params["b1"],
        params["w2t"], params["b2"],
        params["wdt"], params["bd"],
        block_m=block_m,
    )
    return out.reshape(x.shape)


# ---------------------------------------------------------------------------
if __name__ == "__main__":
    hidden_size = 32
    intermediate_size = 64
    batch, seq = 2, 16          # M = 32 rows -> block_m = 16, grid = (2,)

    key = jax.random.PRNGKey(0)
    kx, kp = jax.random.split(key)

    x = jax.random.normal(kx, (batch, seq, hidden_size), dtype=jnp.float32)
    params, ref_params = make_params(kp, hidden_size, intermediate_size)

    out = feedforward(x, params)
    out = jax.block_until_ready(out)

    # Pure-JAX f32 reference (dropout = identity in eval mode).
    def ref(x, p):
        x2d = x.reshape(-1, hidden_size)
        g = x2d @ p["w1t"] + p["b1"]
        gate = g * jax.nn.sigmoid(g)
        v = x2d @ p["w2t"] + p["b2"]
        return ((gate * v) @ p["wdt"] + p["bd"]).reshape(x.shape)

    expected = ref(x, ref_params)
    assert out.shape == x.shape
    # bf16 MXU inputs with f32 accumulation: tolerance loosened vs pure-f32 ref.
    assert jnp.allclose(out, expected, atol=2e-2, rtol=2e-2), "mismatch vs reference"

    # TODO(synk): dropout modeled as identity (eval mode); PyTorch training-mode
    # dropout would need pltpu.prng_random_bits masking inside the kernel.
    print("KERNEL_OK")
</pallas_src>

<mosaic_0001>
module attributes {stable_mosaic.version = 11 : i64} {
  func.func @_ffn_kernel(%arg0: i32, %arg1: memref<16x128xbf16, #tpu.memory_space<vmem>>, %arg2: memref<128x128xbf16, #tpu.memory_space<vmem>>, %arg3: memref<1x128xf32, #tpu.memory_space<vmem>>, %arg4: memref<128x128xbf16, #tpu.memory_space<vmem>>, %arg5: memref<1x128xf32, #tpu.memory_space<vmem>>, %arg6: memref<128x128xbf16, #tpu.memory_space<vmem>>, %arg7: memref<1x128xf32, #tpu.memory_space<vmem>>, %arg8: memref<16x128xf32, #tpu.memory_space<vmem>>) attributes {dimension_semantics = [#tpu.dimension_semantics<parallel>], iteration_bounds = array<i64: 2>, scalar_prefetch = 0 : i64, scratch_operands = 0 : i64, tpu.core_type = #tpu.core_type<tc>, window_params = [{transform_indices = @transform_0, window_bounds = array<i64: 16, 128>}, {pipeline_mode = #tpu.pipeline_mode<synchronous>, transform_indices = @transform_1, window_bounds = array<i64: 128, 128>}, {pipeline_mode = #tpu.pipeline_mode<synchronous>, transform_indices = @transform_2, window_bounds = array<i64: 1, 128>}, {pipeline_mode = #tpu.pipeline_mode<synchronous>, transform_indices = @transform_3, window_bounds = array<i64: 128, 128>}, {pipeline_mode = #tpu.pipeline_mode<synchronous>, transform_indices = @transform_4, window_bounds = array<i64: 1, 128>}, {pipeline_mode = #tpu.pipeline_mode<synchronous>, transform_indices = @transform_5, window_bounds = array<i64: 128, 128>}, {pipeline_mode = #tpu.pipeline_mode<synchronous>, transform_indices = @transform_6, window_bounds = array<i64: 1, 128>}, {transform_indices = @transform_7, window_bounds = array<i64: 16, 128>}]} {
    %c0 = arith.constant 0 : index
    %c0_0 = arith.constant 0 : index
    %0 = vector.load %arg1[%c0, %c0_0] : memref<16x128xbf16, #tpu.memory_space<vmem>>, vector<16x128xbf16>
    %c0_1 = arith.constant 0 : index
    %c0_2 = arith.constant 0 : index
    %1 = vector.load %arg2[%c0_1, %c0_2] : memref<128x128xbf16, #tpu.memory_space<vmem>>, vector<128x128xbf16>
    %cst = arith.constant dense<0.000000e+00> : vector<16x128xf32>
    %2 = tpu.matmul %0, %1, %cst {dimension_numbers = #tpu.dot_dimension_numbers<[1], [0], [0], [1], [0, 0, 1, 1], [], []>} : vector<16x128xbf16>, vector<128x128xbf16>, vector<16x128xf32> -> vector<16x128xf32>
    %c0_3 = arith.constant 0 : index
    %c0_4 = arith.constant 0 : index
    %3 = vector.load %arg3[%c0_3, %c0_4] : memref<1x128xf32, #tpu.memory_space<vmem>>, vector<1x128xf32>
    %4 = vector.broadcast %3 : vector<1x128xf32> to vector<16x128xf32>
    %5 = arith.addf %2, %4 : vector<16x128xf32>
    %6 = arith.negf %5 : vector<16x128xf32>
    %7 = math.exp %6 : vector<16x128xf32>
    %cst_5 = arith.constant 1.000000e+00 : f32
    %8 = vector.broadcast %cst_5 : f32 to vector<16x128xf32>
    %9 = arith.addf %8, %7 : vector<16x128xf32>
    %10 = arith.divf %8, %9 : vector<16x128xf32>
    %11 = arith.mulf %5, %10 : vector<16x128xf32>
    %c0_6 = arith.constant 0 : index
    %c0_7 = arith.constant 0 : index
    %12 = vector.load %arg4[%c0_6, %c0_7] : memref<128x128xbf16, #tpu.memory_space<vmem>>, vector<128x128xbf16>
    %cst_8 = arith.constant dense<0.000000e+00> : vector<16x128xf32>
    %13 = tpu.matmul %0, %12, %cst_8 {dimension_numbers = #tpu.dot_dimension_numbers<[1], [0], [0], [1], [0, 0, 1, 1], [], []>} : vector<16x128xbf16>, vector<128x128xbf16>, vector<16x128xf32> -> vector<16x128xf32>
    %c0_9 = arith.constant 0 : index
    %c0_10 = arith.constant 0 : index
    %14 = vector.load %arg5[%c0_9, %c0_10] : memref<1x128xf32, #tpu.memory_space<vmem>>, vector<1x128xf32>
    %15 = vector.broadcast %14 : vector<1x128xf32> to vector<16x128xf32>
    %16 = arith.addf %13, %15 : vector<16x128xf32>
    %17 = arith.mulf %11, %16 : vector<16x128xf32>
    %18 = arith.truncf %17 : vector<16x128xf32> to vector<16x128xbf16>
    %c0_11 = arith.constant 0 : index
    %c0_12 = arith.constant 0 : index
    %19 = vector.load %arg6[%c0_11, %c0_12] : memref<128x128xbf16, #tpu.memory_space<vmem>>, vector<128x128xbf16>
    %cst_13 = arith.constant dense<0.000000e+00> : vector<16x128xf32>
    %20 = tpu.matmul %18, %19, %cst_13 {dimension_numbers = #tpu.dot_dimension_numbers<[1], [0], [0], [1], [0, 0, 1, 1], [], []>} : vector<16x128xbf16>, vector<128x128xbf16>, vector<16x128xf32> -> vector<16x128xf32>
    %c0_14 = arith.constant 0 : index
    %c0_15 = arith.constant 0 : index
    %21 = vector.load %arg7[%c0_14, %c0_15] : memref<1x128xf32, #tpu.memory_space<vmem>>, vector<1x128xf32>
    %22 = vector.broadcast %21 : vector<1x128xf32> to vector<16x128xf32>
    %23 = arith.addf %20, %22 : vector<16x128xf32>
    %c0_16 = arith.constant 0 : index
    %c0_17 = arith.constant 0 : index
    %24 = vector.load %arg8[%c0_16, %c0_17] : memref<16x128xf32, #tpu.memory_space<vmem>>, vector<16x128xf32>
    tpu.vector_store %arg8[%c0_16, %c0_17], %23 {strides = array<i32>} : memref<16x128xf32, #tpu.memory_space<vmem>>, vector<16x128xf32>,
    return
  }
  func.func @transform_0(%arg0: i32) -> (i32, i32) {
    %c0_i32 = arith.constant 0 : i32
    %c0_i32_0 = arith.constant 0 : i32
    return %arg0, %c0_i32 : i32, i32
  }
  func.func @transform_1(%arg0: i32) -> (i32, i32) {
    %c0_i32 = arith.constant 0 : i32
    %c0_i32_0 = arith.constant 0 : i32
    %c0_i32_1 = arith.constant 0 : i32
    return %c0_i32, %c0_i32_0 : i32, i32
  }
  func.func @transform_2(%arg0: i32) -> (i32, i32) {
    %c0_i32 = arith.constant 0 : i32
    %c0_i32_0 = arith.constant 0 : i32
    %c0_i32_1 = arith.constant 0 : i32
    return %c0_i32, %c0_i32_0 : i32, i32
  }
  func.func @transform_3(%arg0: i32) -> (i32, i32) {
    %c0_i32 = arith.constant 0 : i32
    %c0_i32_0 = arith.constant 0 : i32
    %c0_i32_1 = arith.constant 0 : i32
    return %c0_i32, %c0_i32_0 : i32, i32
  }
  func.func @transform_4(%arg0: i32) -> (i32, i32) {
    %c0_i32 = arith.constant 0 : i32
    %c0_i32_0 = arith.constant 0 : i32
    %c0_i32_1 = arith.constant 0 : i32
    return %c0_i32, %c0_i32_0 : i32, i32
  }
  func.func @transform_5(%arg0: i32) -> (i32, i32) {
    %c0_i32 = arith.constant 0 : i32
    %c0_i32_0 = arith.constant 0 : i32
    %c0_i32_1 = arith.constant 0 : i32
    return %c0_i32, %c0_i32_0 : i32, i32
  }
  func.func @transform_6(%arg0: i32) -> (i32, i32) {
    %c0_i32 = arith.constant 0 : i32
    %c0_i32_0 = arith.constant 0 : i32
    %c0_i32_1 = arith.constant 0 : i32
    return %c0_i32, %c0_i32_0 : i32, i32
  }
  func.func @transform_7(%arg0: i32) -> (i32, i32) {
    %c0_i32 = arith.constant 0 : i32
    %c0_i32_0 = arith.constant 0 : i32
    return %arg0, %c0_i32 : i32, i32
  }
}

module attributes {stable_mosaic.version = 11 : i64} {
  func.func @_ffn_kernel(%arg0: i32, %arg1: memref<16x128xbf16, #tpu.memory_space<vmem>>, %arg2: memref<128x128xbf16, #tpu.memory_space<vmem>>, %arg3: memref<1x128xf32, #tpu.memory_space<vmem>>, %arg4: memref<128x128xbf16, #tpu.memory_space<vmem>>, %arg5: memref<1x128xf32, #tpu.memory_space<vmem>>, %arg6: memref<128x128xbf16, #tpu.memory_space<vmem>>, %arg7: memref<1x128xf32, #tpu.memory_space<vmem>>, %arg8: memref<16x128xf32, #tpu.memory_space<vmem>>) attributes {dimension_semantics = [#tpu.dimension_semantics<parallel>], iteration_bounds = array<i64: 2>, scalar_prefetch = 0 : i64, scratch_operands = 0 : i64, tpu.core_type = #tpu.core_type<tc>, window_params = [{transform_indices = @transform_0, window_bounds = array<i64: 16, 128>}, {pipeline_mode = #tpu.pipeline_mode<synchronous>, transform_indices = @transform_1, window_bounds = array<i64: 128, 128>}, {pipeline_mode = #tpu.pipeline_mode<synchronous>, transform_indices = @transform_2, window_bounds = array<i64: 1, 128>}, {pipeline_mode = #tpu.pipeline_mode<synchronous>, transform_indices = @transform_3, window_bounds = array<i64: 128, 128>}, {pipeline_mode = #tpu.pipeline_mode<synchronous>, transform_indices = @transform_4, window_bounds = array<i64: 1, 128>}, {pipeline_mode = #tpu.pipeline_mode<synchronous>, transform_indices = @transform_5, window_bounds = array<i64: 128, 128>}, {pipeline_mode = #tpu.pipeline_mode<synchronous>, transform_indices = @transform_6, window_bounds = array<i64: 1, 128>}, {transform_indices = @transform_7, window_bounds = array<i64: 16, 128>}]} {
    %c0 = arith.constant 0 : index
    %c0_0 = arith.constant 0 : index
    %0 = vector.load %arg1[%c0, %c0_0] : memref<16x128xbf16, #tpu.memory_space<vmem>>, vector<16x128xbf16>
    %c0_1 = arith.constant 0 : index
    %c0_2 = arith.constant 0 : index
    %1 = vector.load %arg2[%c0_1, %c0_2] : memref<128x128xbf16, #tpu.memory_space<vmem>>, vector<128x128xbf16>
    %cst = arith.constant dense<0.000000e+00> : vector<16x128xf32>
    %2 = tpu.matmul %0, %1, %cst {dimension_numbers = #tpu.dot_dimension_numbers<[1], [0], [0], [1], [0, 0, 1, 1], [], []>} : vector<16x128xbf16>, vector<128x128xbf16>, vector<16x128xf32> -> vector<16x128xf32>
    %c0_3 = arith.constant 0 : index
    %c0_4 = arith.constant 0 : index
    %3 = vector.load %arg3[%c0_3, %c0_4] : memref<1x128xf32, #tpu.memory_space<vmem>>, vector<1x128xf32>
    %4 = vector.broadcast %3 : vector<1x128xf32> to vector<16x128xf32>
    %5 = arith.addf %2, %4 : vector<16x128xf32>
    %6 = arith.negf %5 : vector<16x128xf32>
    %7 = math.exp %6 : vector<16x128xf32>
    %cst_5 = arith.constant 1.000000e+00 : f32
    %8 = vector.broadcast %cst_5 : f32 to vector<16x128xf32>
    %9 = arith.addf %8, %7 : vector<16x128xf32>
    %10 = arith.divf %8, %9 : vector<16x128xf32>
    %11 = arith.mulf %5, %10 : vector<16x128xf32>
    %c0_6 = arith.constant 0 : index
    %c0_7 = arith.constant 0 : index
    %12 = vector.load %arg4[%c0_6, %c0_7] : memref<128x128xbf16, #tpu.memory_space<vmem>>, vector<128x128xbf16>
    %cst_8 = arith.constant dense<0.000000e+00> : vector<16x128xf32>
    %13 = tpu.matmul %0, %12, %cst_8 {dimension_numbers = #tpu.dot_dimension_numbers<[1], [0], [0], [1], [0, 0, 1, 1], [], []>} : vector<16x128xbf16>, vector<128x128xbf16>, vector<16x128xf32> -> vector<16x128xf32>
    %c0_9 = arith.constant 0 : index
    %c0_10 = arith.constant 0 : index
    %14 = vector.load %arg5[%c0_9, %c0_10] : memref<1x128xf32, #tpu.memory_space<vmem>>, vector<1x128xf32>
    %15 = vector.broadcast %14 : vector<1x128xf32> to vector<16x128xf32>
    %16 = arith.addf %13, %15 : vector<16x128xf32>
    %17 = arith.mulf %11, %16 : vector<16x128xf32>
    %18 = arith.truncf %17 : vector<16x128xf32> to vector<16x128xbf16>
    %c0_11 = arith.constant 0 : index
    %c0_12 = arith.constant 0 : index
    %19 = vector.load %arg6[%c0_11, %c0_12] : memref<128x128xbf16, #tpu.memory_space<vmem>>, vector<128x128xbf16>
    %cst_13 = arith.constant dense<0.000000e+00> : vector<16x128xf32>
    %20 = tpu.matmul %18, %19, %cst_13 {dimension_numbers = #tpu.dot_dimension_numbers<[1], [0], [0], [1], [0, 0, 1, 1], [], []>} : vector<16x128xbf16>, vector<128x128xbf16>, vector<16x128xf32> -> vector<16x128xf32>
    %c0_14 = arith.constant 0 : index
    %c0_15 = arith.constant 0 : index
    %21 = vector.load %arg7[%c0_14, %c0_15] : memref<1x128xf32, #tpu.memory_space<vmem>>, vector<1x128xf32>
    %22 = vector.broadcast %21 : vector<1x128xf32> to vector<16x128xf32>
    %23 = arith.addf %20, %22 : vector<16x128xf32>
    %c0_16 = arith.constant 0 : index
    %c0_17 = arith.constant 0 : index
    %24 = vector.load %arg8[%c0_16, %c0_17] : memref<16x128xf32, #tpu.memory_space<vmem>>, vector<16x128xf32>
    tpu.vector_store %arg8[%c0_16, %c0_17], %23 {strides = array<i32>} : memref<16x128xf32, #tpu.memory_space<vmem>>, vector<16x128xf32>,
    return
  }
  func.func @transform_0(%arg0: i32) -> (i32, i32) {
    %c0_i32 = arith.constant 0 : i32
    %c0_i32_0 = arith.constant 0 : i32
    return %arg0, %c0_i32 : i32, i32
  }
  func.func @transform_1(%arg0: i32) -> (i32, i32) {
    %c0_i32 = arith.constant 0 : i32
    %c0_i32_0 = arith.constant 0 : i32
    %c0_i32_1 = arith.constant 0 : i32
    return %c0_i32, %c0_i32_0 : i32, i32
  }
  func.func @transform_2(%arg0: i32) -> (i32, i32) {
    %c0_i32 = arith.constant 0 : i32
    %c0_i32_0 = arith.constant 0 : i32
    %c0_i32_1 = arith.constant 0 : i32
    return %c0_i32, %c0_i32_0 : i32, i32
  }
  func.func @transform_3(%arg0: i32) -> (i32, i32) {
    %c0_i32 = arith.constant 0 : i32
    %c0_i32_0 = arith.constant 0 : i32
    %c0_i32_1 = arith.constant 0 : i32
    return %c0_i32, %c0_i32_0 : i32, i32
  }
  func.func @transform_4(%arg0: i32) -> (i32, i32) {
    %c0_i32 = arith.constant 0 : i32
    %c0_i32_0 = arith.constant 0 : i32
    %c0_i32_1 = arith.constant 0 : i32
    return %c0_i32, %c0_i32_0 : i32, i32
  }
  func.func @transform_5(%arg0: i32) -> (i32, i32) {
    %c0_i32 = arith.constant 0 : i32
    %c0_i32_0 = arith.constant 0 : i32
    %c0_i32_1 = arith.constant 0 : i32
    return %c0_i32, %c0_i32_0 : i32, i32
  }
  func.func @transform_6(%arg0: i32) -> (i32, i32) {
    %c0_i32 = arith.constant 0 : i32
    %c0_i32_0 = arith.constant 0 : i32
    %c0_i32_1 = arith.constant 0 : i32
    return %c0_i32, %c0_i32_0 : i32, i32
  }
  func.func @transform_7(%arg0: i32) -> (i32, i32) {
    %c0_i32 = arith.constant 0 : i32
    %c0_i32_0 = arith.constant 0 : i32
    return %arg0, %c0_i32 : i32, i32
  }
}

</mosaic_0001>

<llo_original>
// kernel: tpu_custom_call.1
$region0: #{tpu_custom_call.1}
  #allocation0 [shape = 'u32[]', space=smem, size = 0x4, offset = 0x4, fixed_abs, tag = 'smem constant byte address 0x4 - core index']
  #allocation1 [shape = 'u32[144,128]{1,0:T(1,128)}', space=vmem, size = 0x12000, scoped, tag = 'internal scratch']
  %s0 = inlined_call_operand.hbm [shape: bf16[32,128], index: 0, kind: input, shape index: {}]
  %s1 = inlined_call_operand.hbm [shape: bf16[128,128], index: 1, kind: input, shape index: {}]
  %s2 = inlined_call_operand.vmem [shape: f32[1,128], index: 2, kind: input, shape index: {}]
  %s3 = inlined_call_operand.hbm [shape: bf16[128,128], index: 3, kind: input, shape index: {}]
  %s4 = inlined_call_operand.vmem [shape: f32[1,128], index: 4, kind: input, shape index: {}]
  %s5 = inlined_call_operand.hbm [shape: bf16[128,128], index: 5, kind: input, shape index: {}]
  %s6 = inlined_call_operand.vmem [shape: f32[1,128], index: 6, kind: input, shape index: {}]
  %s7 = inlined_call_operand.hbm [shape: f32[32,128], index: 7, kind: output, shape index: {}]
  %s8 = sld [smem:[#allocation0]]
  $region77: #{tpu_custom_call.1} parent=0
    _
  %s10 = ssub.s32 1, %s8
  %s11 = scalar_select 0, %s10, %s8
  $region1: #{tpu_custom_call.1} parent=0
    #allocation2 [shape = 'u8[8192]{0}', space=vmem, size = 0x2000, scoped, tag = 'input window, operand 0']
    #allocation3 [shape = 's32[2]{0}', space=sflag, size = 0x8, scoped, tag = 'scoped memory for tpu_custom_call.1']
    #allocation4 [shape = 's32[2]{0}', space=sflag, size = 0x8, scoped, tag = 'scoped memory for tpu_custom_call.1']
    #allocation5 [shape = 'u8[32768]{0}', space=vmem, size = 0x8000, scoped, tag = 'input window, operand 1, single buffered']
    #allocation6 [shape = 's32[1]{0}', space=sflag, size = 0x4, scoped, tag = 'scoped memory for tpu_custom_call.1']
    #allocation7 [shape = 'u8[32768]{0}', space=vmem, size = 0x8000, scoped, tag = 'input window, operand 3, single buffered']
    #allocation8 [shape = 'u8[32768]{0}', space=vmem, size = 0x8000, scoped, tag = 'input window, operand 5, single buffered']
    #allocation9 [shape = 's32[1]{0}', space=sflag, size = 0x4, scoped, tag = 'scoped memory for tpu_custom_call.1']
    #allocation10 [shape = 'u8[16384]{0}', space=vmem, size = 0x4000, scoped, tag = 'output window, operand 0']
    %12 = vsyncpa [#allocation3], 0
    %s13 = scalar_lea.sflag [#allocation3], 1
    %14 = vsyncpa %s13, 0
    %15 = vsyncpa [#allocation6], 0
    %16 = vsyncpa [#allocation9], 0
    %17 = vsyncpa [#allocation4], 0
    %s18 = scalar_lea.sflag [#allocation4], 1
    %19 = vsyncpa %s18, 0
    loop: start=0, step=1, limit=4
    $region2: #{tpu_custom_call.1} parent=1 // loop_pre_header
      _
    $region3: #{tpu_custom_call.1} parent=1 // loop_header
      %s21 = sphi 0, %s25
      %p22 = scmp.ge.s32.totalorder %s21, 4
      %s31 = sphi 0, %s33
      %s34 = sphi 0, %s31
      %s35 = sphi 0, %s34
      %s51 = sphi 0, %s35
      %s55 = sphi 0, %s55
      %s57 = sphi 0, %s55
      %s58 = sphi 0, %s57
      %s72 = sphi 0, %s58
      %s76 = sphi 0, %s76
      %s78 = sphi 0, %s76
      %s79 = sphi 0, %s78
      %s93 = sphi 0, %s79
      %s97 = sphi 0, %s97
      %s99 = sphi 0, %s97
      %s100 = sphi 0, %s99
      %s114 = sphi 0, %s100
      %s118 = sphi 0, %s118
      %s120 = sphi 0, %s118
      %s121 = sphi 0, %s120
      %s135 = sphi 0, %s121
      %s139 = sphi 0, %s139
      %s141 = sphi 0, %s139
      %s142 = sphi 0, %s141
      %s156 = sphi 0, %s142
      %s160 = sphi 0, %s160
      %s162 = sphi 0, %s160
      %s163 = sphi 0, %s162
      %s177 = sphi 0, %s163
      %s183 = sphi 0, %s185
      %s186 = sphi 0, %s183
      %s187 = sphi 0, %s186
      %s203 = sphi 0, %s187
    $region4: #{tpu_custom_call.1} parent=1 // loop_header_branch
      %24 = sbr.rel (%p22) target = $region8
    $region5: #{tpu_custom_call.1} parent=1 // loop_body
      %s26 = ssub.s32 %s21, 1
      %s27 = ssub.s32 %s21, 2
      %s28 = sadd.s32 %s21, 1
      %s29 = ssub.s32 %s21, %s28
      %p30 = scmp.eq.s32.totalorder %s29, 0
      %s32 = sadd.s32 %s31, 1
      %s33 = scalar_select %p30, %s31, %s32
      %p36 = pneg %p30
      %p37 = scmp.eq.s32.totalorder %s21, 1
      %p38 = por %p36, %p37
      %p39 = scmp.ne.s32.totalorder %s31, %s34
      %p40 = scmp.eq.s32.totalorder %s21, 0
      %p41 = por %p39, %p40
      %p42 = scmp.ne.s32.totalorder %s31, %s34
      %p43 = scmp.eq.s32.totalorder %s26, 1
      %p44 = por %p42, %p43
      %p45 = scmp.ne.s32.totalorder %s34, %s35
      %p46 = scmp.eq.s32.totalorder %s26, 0
      %p47 = por %p45, %p46
      %p48 = scmp.ne.s32.totalorder %s34, %s35
      %p49 = scmp.eq.s32.totalorder %s27, 1
      %p50 = por %p48, %p49
      %p52 = scmp.ne.s32.totalorder %s35, %s51
      %p53 = scmp.eq.s32.totalorder %s27, 0
      %p54 = por %p52, %p53
      %s56 = sadd.s32 %s55, 1
      %p59 = scmp.eq.s32.totalorder %s21, 1
      %p60 = scmp.ne.s32.totalorder %s55, %s57
      %p61 = scmp.eq.s32.totalorder %s21, 0
      %p62 = por %p60, %p61
      %p63 = scmp.ne.s32.totalorder %s55, %s57
      %p64 = scmp.eq.s32.totalorder %s26, 1
      %p65 = por %p63, %p64
      %p66 = scmp.ne.s32.totalorder %s57, %s58
      %p67 = scmp.eq.s32.totalorder %s26, 0
      %p68 = por %p66, %p67
      %p69 = scmp.ne.s32.totalorder %s57, %s58
      %p70 = scmp.eq.s32.totalorder %s27, 1
      %p71 = por %p69, %p70
      %p73 = scmp.ne.s32.totalorder %s58, %s72
      %p74 = scmp.eq.s32.totalorder %s27, 0
      %p75 = por %p73, %p74
      %s77 = sadd.s32 %s76, 1
      %p80 = scmp.eq.s32.totalorder %s21, 1
      %p81 = scmp.ne.s32.totalorder %s76, %s78
      %p82 = scmp.eq.s32.totalorder %s21, 0
      %p83 = por %p81, %p82
      %p84 = scmp.ne.s32.totalorder %s76, %s78
      %p85 = scmp.eq.s32.totalorder %s26, 1
      %p86 = por %p84, %p85
      %p87 = scmp.ne.s32.totalorder %s78, %s79
      %p88 = scmp.eq.s32.totalorder %s26, 0
      %p89 = por %p87, %p88
      %p90 = scmp.ne.s32.totalorder %s78, %s79
      %p91 = scmp.eq.s32.totalorder %s27, 1
      %p92 = por %p90, %p91
      %p94 = scmp.ne.s32.totalorder %s79, %s93
      %p95 = scmp.eq.s32.totalorder %s27, 0
      %p96 = por %p94, %p95
      %s98 = sadd.s32 %s97, 1
      %p101 = scmp.eq.s32.totalorder %s21, 1
      %p102 = scmp.ne.s32.totalorder %s97, %s99
      %p103 = scmp.eq.s32.totalorder %s21, 0
      %p104 = por %p102, %p103
      %p105 = scmp.ne.s32.totalorder %s97, %s99
      %p106 = scmp.eq.s32.totalorder %s26, 1
      %p107 = por %p105, %p106
      %p108 = scmp.ne.s32.totalorder %s99, %s100
      %p109 = scmp.eq.s32.totalorder %s26, 0
      %p110 = por %p108, %p109
      %p111 = scmp.ne.s32.totalorder %s99, %s100
      %p112 = scmp.eq.s32.totalorder %s27, 1
      %p113 = por %p111, %p112
      %p115 = scmp.ne.s32.totalorder %s100, %s114
      %p116 = scmp.eq.s32.totalorder %s27, 0
      %p117 = por %p115, %p116
      %s119 = sadd.s32 %s118, 1
      %p122 = scmp.eq.s32.totalorder %s21, 1
      %p123 = scmp.ne.s32.totalorder %s118, %s120
      %p124 = scmp.eq.s32.totalorder %s21, 0
      %p125 = por %p123, %p124
      %p126 = scmp.ne.s32.totalorder %s118, %s120
      %p127 = scmp.eq.s32.totalorder %s26, 1
      %p128 = por %p126, %p127
      %p129 = scmp.ne.s32.totalorder %s120, %s121
      %p130 = scmp.eq.s32.totalorder %s26, 0
      %p131 = por %p129, %p130
      %p132 = scmp.ne.s32.totalorder %s120, %s121
      %p133 = scmp.eq.s32.totalorder %s27, 1
      %p134 = por %p132, %p133
      %p136 = scmp.ne.s32.totalorder %s121, %s135
      %p137 = scmp.eq.s32.totalorder %s27, 0
      %p138 = por %p136, %p137
      %s140 = sadd.s32 %s139, 1
      %p143 = scmp.eq.s32.totalorder %s21, 1
      %p144 = scmp.ne.s32.totalorder %s139, %s141
      %p145 = scmp.eq.s32.totalorder %s21, 0
      %p146 = por %p144, %p145
      %p147 = scmp.ne.s32.totalorder %s139, %s141
      %p148 = scmp.eq.s32.totalorder %s26, 1
      %p149 = por %p147, %p148
      %p150 = scmp.ne.s32.totalorder %s141, %s142
      %p151 = scmp.eq.s32.totalorder %s26, 0
      %p152 = por %p150, %p151
      %p153 = scmp.ne.s32.totalorder %s141, %s142
      %p154 = scmp.eq.s32.totalorder %s27, 1
      %p155 = por %p153, %p154
      %p157 = scmp.ne.s32.totalorder %s142, %s156
      %p158 = scmp.eq.s32.totalorder %s27, 0
      %p159 = por %p157, %p158
      %s161 = sadd.s32 %s160, 1
      %p164 = scmp.eq.s32.totalorder %s21, 1
      %p165 = scmp.ne.s32.totalorder %s160, %s162
      %p166 = scmp.eq.s32.totalorder %s21, 0
      %p167 = por %p165, %p166
      %p168 = scmp.ne.s32.totalorder %s160, %s162
      %p169 = scmp.eq.s32.totalorder %s26, 1
      %p170 = por %p168, %p169
      %p171 = scmp.ne.s32.totalorder %s162, %s163
      %p172 = scmp.eq.s32.totalorder %s26, 0
      %p173 = por %p171, %p172
      %p174 = scmp.ne.s32.totalorder %s162, %s163
      %p175 = scmp.eq.s32.totalorder %s27, 1
      %p176 = por %p174, %p175
      %p178 = scmp.ne.s32.totalorder %s163, %s177
      %p179 = scmp.eq.s32.totalorder %s27, 0
      %p180 = por %p178, %p179
      %s181 = ssub.s32 %s21, %s28
      %p182 = scmp.eq.s32.totalorder %s181, 0
      %s184 = sadd.s32 %s183, 1
      %s185 = scalar_select %p182, %s183, %s184
      %p188 = pneg %p182
      %p189 = scmp.eq.s32.totalorder %s21, 1
      %p190 = por %p188, %p189
      %p191 = scmp.ne.s32.totalorder %s183, %s186
      %p192 = scmp.eq.s32.totalorder %s21, 0
      %p193 = por %p191, %p192
      %p194 = scmp.ne.s32.totalorder %s183, %s186
      %p195 = scmp.eq.s32.totalorder %s26, 1
      %p196 = por %p194, %p195
      %p197 = scmp.ne.s32.totalorder %s186, %s187
      %p198 = scmp.eq.s32.totalorder %s26, 0
      %p199 = por %p197, %p198
      %p200 = scmp.ne.s32.totalorder %s186, %s187
      %p201 = scmp.eq.s32.totalorder %s27, 1
      %p202 = por %p200, %p201
      %p204 = scmp.ne.s32.totalorder %s187, %s203
      %p205 = scmp.eq.s32.totalorder %s27, 0
      %p206 = por %p204, %p205
      %p207 = scmp.le.s32.totalorder 1, %s21
      %p208 = scmp.lt.s32.totalorder %s21, 3
      %p209 = pnand %p207, %p208
      %p210 = pneg %p209
      // Predicated region
      $region9: #{tpu_custom_call.1} parent=5 // pred_check
        _
      $region10: #{tpu_custom_call.1} parent=5 // pred_check_branch
        %212 = sbr.rel (%p209) target = $region12
      $region11: #{tpu_custom_call.1} parent=5 // pred_region
        %s213 = ssub.s32 %s21, 1
        // Predicated region
        $region13: #{tpu_custom_call.1} parent=11 // pred_check
          %p214 = pneg %p68
        $region14: #{tpu_custom_call.1} parent=11 // pred_check_branch
          %216 = sbr.rel (%p214) target = $region16
        $region15: #{tpu_custom_call.1} parent=11 // pred_region
          %s218 = ssub.s32 1024, 1024
          %219 = vsyncadd [#allocation6], %s218
          %s220 = sshll.u32 [#allocation5], 4
          %s221 = int_to_ptr.vmem [resolvable:$true] %s220
          %226 = dma.hbm_to_vmem [thread:$0]  %s1, 1024, %s221, [#allocation6], 64, 64, 4
        $region16: #{tpu_custom_call.1} parent=11 // pred_fallthru
          _
        // Predicated region
        $region17: #{tpu_custom_call.1} parent=11 // pred_check
          %p227 = pneg %p89
        $region18: #{tpu_custom_call.1} parent=11 // pred_check_branch
          %229 = sbr.rel (%p227) target = $region20
        $region19: #{tpu_custom_call.1} parent=11 // pred_region
          _
        $region20: #{tpu_custom_call.1} parent=11 // pred_fallthru
          _
        // Predicated region
        $region21: #{tpu_custom_call.1} parent=11 // pred_check
          %p230 = pneg %p110
        $region22: #{tpu_custom_call.1} parent=11 // pred_check_branch
          %232 = sbr.rel (%p230) target = $region24
        $region23: #{tpu_custom_call.1} parent=11 // pred_region
          %s234 = ssub.s32 1024, 1024
          %235 = vsyncadd [#allocation6], %s234
          %s236 = sshll.u32 [#allocation7], 4
          %s237 = int_to_ptr.vmem [resolvable:$true] %s236
          %242 = dma.hbm_to_vmem [thread:$0]  %s3, 1024, %s237, [#allocation6], 64, 64, 4
        $region24: #{tpu_custom_call.1} parent=11 // pred_fallthru
          _
        // Predicated region
        $region25: #{tpu_custom_call.1} parent=11 // pred_check
          %p243 = pneg %p131
        $region26: #{tpu_custom_call.1} parent=11 // pred_check_branch
          %245 = sbr.rel (%p243) target = $region28
        $region27: #{tpu_custom_call.1} parent=11 // pred_region
          _
        $region28: #{tpu_custom_call.1} parent=11 // pred_fallthru
          _
        // Predicated region
        $region29: #{tpu_custom_call.1} parent=11 // pred_check
          %p246 = pneg %p152
        $region30: #{tpu_custom_call.1} parent=11 // pred_check_branch
          %248 = sbr.rel (%p246) target = $region32
        $region31: #{tpu_custom_call.1} parent=11 // pred_region
          %s250 = ssub.s32 1024, 1024
          %251 = vsyncadd [#allocation9], %s250
          %s252 = sshll.u32 [#allocation8], 4
          %s253 = int_to_ptr.vmem [resolvable:$true] %s252
          %258 = dma.hbm_to_vmem [thread:$0]  %s5, 1024, %s253, [#allocation9], 64, 64, 4
        $region32: #{tpu_custom_call.1} parent=11 // pred_fallthru
          _
        // Predicated region
        $region33: #{tpu_custom_call.1} parent=11 // pred_check
          %p259 = pneg %p173
        $region34: #{tpu_custom_call.1} parent=11 // pred_check_branch
          %261 = sbr.rel (%p259) target = $region36
        $region35: #{tpu_custom_call.1} parent=11 // pred_region
          _
        $region36: #{tpu_custom_call.1} parent=11 // pred_fallthru
          _
      $region12: #{tpu_custom_call.1} parent=5 // pred_fallthru
        _
      %p262 = scmp.lt.s32.totalorder %s21, 2
      // Predicated region
      $region37: #{tpu_custom_call.1} parent=5 // pred_check
        %p263 = pneg %p262
      $region38: #{tpu_custom_call.1} parent=5 // pred_check_branch
        %265 = sbr.rel (%p263) target = $region40
      $region39: #{tpu_custom_call.1} parent=5 // pred_region
        // Predicated region
        $region41: #{tpu_custom_call.1} parent=39 // pred_check
          %p266 = pneg %p41
        $region42: #{tpu_custom_call.1} parent=39 // pred_check_branch
          %268 = sbr.rel (%p266) target = $region44
        $region43: #{tpu_custom_call.1} parent=39 // pred_region
          %s269 = sand.u32 %s31, 1
          %s270 = scalar_lea.sflag [#allocation3], %s269
          %s271 = sand.u32 %s31, 1
          %s272 = smul.addr %s271, 8
          %s273 = scalar_lea.vmem [#allocation2], %s272
          %s274 = smul.u32 2, %s21
          %s276 = ssub.s32 128, 128
          %277 = vsyncadd %s270, %s276
          %s278 = smul.addr %s274, 64
          %s279 = scalar_lea.hbm %s0, %s278
          %s280 = sshll.u32 %s273, 4
          %s281 = int_to_ptr.vmem [resolvable:$true] %s280
          %286 = dma.hbm_to_vmem [thread:$0]  %s279, 128, %s281, %s270, 64, 64, 4
        $region44: #{tpu_custom_call.1} parent=39 // pred_fallthru
          _
      $region40: #{tpu_custom_call.1} parent=5 // pred_fallthru
        _
      %p287 = scmp.le.s32.totalorder 1, %s21
      %p288 = scmp.lt.s32.totalorder %s21, 3
      %p289 = pnand %p287, %p288
      %p290 = pneg %p289
      // Predicated region
      $region45: #{tpu_custom_call.1} parent=5 // pred_check
        _
      $region46: #{tpu_custom_call.1} parent=5 // pred_check_branch
        %292 = sbr.rel (%p289) target = $region48
      $region47: #{tpu_custom_call.1} parent=5 // pred_region
        %s293 = ssub.s32 %s21, 1
        %s294 = sand.u32 %s34, 1
        %s295 = scalar_lea.sflag [#allocation3], %s294
        %s296 = sand.u32 %s34, 1
        %s297 = smul.addr %s296, 8
        %s298 = scalar_lea.vmem [#allocation2], %s297
        // Predicated region
        $region49: #{tpu_custom_call.1} parent=47 // pred_check
          %p299 = pneg %p47
        $region50: #{tpu_custom_call.1} parent=47 // pred_check_branch
          %301 = sbr.rel (%p299) target = $region52
        $region51: #{tpu_custom_call.1} parent=47 // pred_region
          %302 = dma.done %s295, 128
        $region52: #{tpu_custom_call.1} parent=47 // pred_fallthru
          _
        // Predicated region
        $region53: #{tpu_custom_call.1} parent=47 // pred_check
          %p303 = pneg %p68
        $region54: #{tpu_custom_call.1} parent=47 // pred_check_branch
          %305 = sbr.rel (%p303) target = $region56
        $region55: #{tpu_custom_call.1} parent=47 // pred_region
          %306 = dma.done [#allocation6], 1024
        $region56: #{tpu_custom_call.1} parent=47 // pred_fallthru
          _
        // Predicated region
        $region57: #{tpu_custom_call.1} parent=47 // pred_check
          %p307 = pneg %p110
        $region58: #{tpu_custom_call.1} parent=47 // pred_check_branch
          %309 = sbr.rel (%p307) target = $region60
        $region59: #{tpu_custom_call.1} parent=47 // pred_region
          %310 = dma.done [#allocation6], 1024
        $region60: #{tpu_custom_call.1} parent=47 // pred_fallthru
          _
        // Predicated region
        $region61: #{tpu_custom_call.1} parent=47 // pred_check
          %p311 = pneg %p152
        $region62: #{tpu_custom_call.1} parent=47 // pred_check_branch
          %313 = sbr.rel (%p311) target = $region64
        $region63: #{tpu_custom_call.1} parent=47 // pred_region
          %314 = dma.done [#allocation9], 1024
        $region64: #{tpu_custom_call.1} parent=47 // pred_fallthru
          _
        %s315 = sand.u32 %s34, 1
        %s316 = scalar_lea.sflag [#allocation3], %s315
        %s317 = sand.u32 %s34, 1
        %s318 = smul.addr %s317, 8
        %s319 = scalar_lea.vmem [#allocation2], %s318
        %p320 = pneg %p47
        %p321 = pneg %p44
        %p322 = pneg %p68
        %p323 = pneg %p65
        %p324 = pneg %p89
        %p325 = pneg %p86
        %p326 = pneg %p110
        %p327 = pneg %p107
        %p328 = pneg %p131
        %p329 = pneg %p128
        %p330 = pneg %p152
        %p331 = pneg %p149
        %p332 = pneg %p173
        %p333 = pneg %p170
        %p334 = pneg %p199
        %p335 = pneg %p196
        %s336 = sand.u32 %s186, 1
        %s337 = scalar_lea.sflag [#allocation4], %s336
        %s338 = sand.u32 %s186, 1
        %s339 = smul.addr %s338, 16
        %s340 = scalar_lea.vmem [#allocation10], %s339
        %s341 = smul.u32 2, %s26
        %s342 = smul.u32 2, %s26
        %v344 = vld [vmem:[%s298] sm:$0xf]
        %v345 = vld [vmem:[%s298 + $0x4] sm:$0xf]
        %v346 = vld [vmem:[#allocation5] sm:$0xf]
        %v347 = vld [vmem:[#allocation5 + $0x4] sm:$0xf]
        %v348 = vld [vmem:[#allocation5 + $0x8] sm:$0xf]
        %v349 = vld [vmem:[#allocation5 + $0xc] sm:$0xf]
        %v350 = vld [vmem:[#allocation5 + $0x10] sm:$0xf]
        %v351 = vld [vmem:[#allocation5 + $0x14] sm:$0xf]
        %v352 = vld [vmem:[#allocation5 + $0x18] sm:$0xf]
        %v353 = vld [vmem:[#allocation5 + $0x1c] sm:$0xf]
        %v354 = vld [vmem:[#allocation5 + $0x20] sm:$0xf]
        %v355 = vld [vmem:[#allocation5 + $0x24] sm:$0xf]
        %v356 = vld [vmem:[#allocation5 + $0x28] sm:$0xf]
        %v357 = vld [vmem:[#allocation5 + $0x2c] sm:$0xf]
        %v358 = vld [vmem:[#allocation5 + $0x30] sm:$0xf]
        %v359 = vld [vmem:[#allocation5 + $0x34] sm:$0xf]
        %v360 = vld [vmem:[#allocation5 + $0x38] sm:$0xf]
        %v361 = vld [vmem:[#allocation5 + $0x3c] sm:$0xf]
        %v362 = vld [vmem:[%s2] sm:$0x1]
        %v364 = vlaneseq
        %v365 = vshrl.u32 %v364, 7
        %v366 = vsub.s32 0, %v365
        %v367 = vrot.slane %v362, %v366
        %v371 = vunpack.c.l.b16 %v344
        %v372 = vunpack.c.l.b16 %v345
        %v373 = vpack.c.b16 %v372, %v371
        %v391 = vunpack.c.l.b16 %v346
        %v392 = vunpack.c.l.b16 %v347
        %v393 = vunpack.c.l.b16 %v348
        %v394 = vunpack.c.l.b16 %v349
        %v395 = vunpack.c.l.b16 %v350
        %v396 = vunpack.c.l.b16 %v351
        %v397 = vunpack.c.l.b16 %v352
        %v398 = vunpack.c.l.b16 %v353
        %v399 = vunpack.c.l.b16 %v354
        %v400 = vunpack.c.l.b16 %v355
        %v401 = vunpack.c.l.b16 %v356
        %v402 = vunpack.c.l.b16 %v357
        %v403 = vunpack.c.l.b16 %v358
        %v404 = vunpack.c.l.b16 %v359
        %v405 = vunpack.c.l.b16 %v360
        %v406 = vunpack.c.l.b16 %v361
        %v407 = vpack.c.b16 %v392, %v391
        %v408 = vpack.c.b16 %v394, %v393
        %v409 = vpack.c.b16 %v396, %v395
        %v410 = vpack.c.b16 %v398, %v397
        %v411 = vpack.c.b16 %v400, %v399
        %v412 = vpack.c.b16 %v402, %v401
        %v413 = vpack.c.b16 %v404, %v403
        %v414 = vpack.c.b16 %v406, %v405
        %423 = vmatprep.subr.bf16.mxu0 0
        %424 = vmatpush1.bf16.msra.mxu0 %v414
        %425 = vmatprep.subr.bf16.mxu0 0
        %426 = vmatpush1.bf16.msra.mxu0 %v413
        %427 = vmatprep.subr.bf16.mxu0 0
        %428 = vmatpush1.bf16.msra.mxu0 %v412
        %429 = vmatprep.subr.bf16.mxu0 0
        %430 = vmatpush1.bf16.msra.mxu0 %v411
        %431 = vmatprep.subr.bf16.mxu0 0
        %432 = vmatpush1.bf16.msra.mxu0 %v410
        %433 = vmatprep.subr.bf16.mxu0 0
        %434 = vmatpush1.bf16.msra.mxu0 %v409
        %435 = vmatprep.subr.bf16.mxu0 0
        %436 = vmatpush1.bf16.msra.mxu0 %v408
        %437 = vmatprep.subr.bf16.mxu0 0
        %438 = vmatpush1.bf16.msra.mxu0 %v407
        %439 = vmatprep.subr.bf16.mxu0 0
        %440 = vmatpush2.bf16.msra.mxu0 0
        %441 = vmatprep.subr.bf16.mxu0 0
        %442 = vmatpush2.bf16.msra.mxu0 0
        %443 = vmatprep.subr.bf16.mxu0 0
        %444 = vmatpush2.bf16.msra.mxu0 0
        %445 = vmatprep.subr.bf16.mxu0 0
        %446 = vmatpush2.bf16.msra.mxu0 0
        %447 = vmatprep.subr.bf16.mxu0 0
        %448 = vmatpush2.bf16.msra.mxu0 0
        %449 = vmatprep.subr.bf16.mxu0 0
        %450 = vmatpush2.bf16.msra.mxu0 0
        %451 = vmatprep.subr.bf16.mxu0 0
        %452 = vmatpush2.bf16.msra.mxu0 0
        %453 = vmatprep.subr.bf16.mxu0 0
        %454 = vmatpush2.bf16.msra.mxu0 0
        %455 = vmatprep.mubr.bf16.mxu0 0
        %456 = vmatmul.mubr.bf16.gmra.mxu0 %v373
        %v457 = vpop.f32.mrf.mxu0
        %v458 = vadd.f32 %v367, %v457
        %v459 = vpop.f32.mrf.mxu0
        %v460 = vpop.f32.mrf.mxu0
        %v461 = vadd.f32 %v367, %v460
        %v462 = vpop.f32.mrf.mxu0
        %463 = vdwg.mxu0
        %v464 = vxor.u32 %v458, 2147483648
        %v465 = vxor.u32 %v461, 2147483648
        %v466 = vmul.f32 %v464, 1.442695
        %v467 = vpow.pop %v466
        %v468 = vmul.f32 %v465, 1.442695
        %v469 = vpow.pop %v468
        %v470 = vadd.f32 %v467, 1.0
        %v471 = vadd.f32 %v469, 1.0
        %v472 = vrcp.pop %v470
        %v473 = vmul.f32 1.0, %v472
        %v474 = vrcp.pop %v471
        %v475 = vmul.f32 1.0, %v474
        %v476 = vmul.f32 %v458, %v473
        %v477 = vmul.f32 %v461, %v475
        %v478 = vld [vmem:[#allocation7] sm:$0xf]
        %v479 = vld [vmem:[#allocation7 + $0x4] sm:$0xf]
        %v480 = vld [vmem:[#allocation7 + $0x8] sm:$0xf]
        %v481 = vld [vmem:[#allocation7 + $0xc] sm:$0xf]
        %v482 = vld [vmem:[#allocation7 + $0x10] sm:$0xf]
        %v483 = vld [vmem:[#allocation7 + $0x14] sm:$0xf]
        %v484 = vld [vmem:[#allocation7 + $0x18] sm:$0xf]
        %v485 = vld [vmem:[#allocation7 + $0x1c] sm:$0xf]
        %v486 = vld [vmem:[#allocation7 + $0x20] sm:$0xf]
        %v487 = vld [vmem:[#allocation7 + $0x24] sm:$0xf]
        %v488 = vld [vmem:[#allocation7 + $0x28] sm:$0xf]
        %v489 = vld [vmem:[#allocation7 + $0x2c] sm:$0xf]
        %v490 = vld [vmem:[#allocation7 + $0x30] sm:$0xf]
        %v491 = vld [vmem:[#allocation7 + $0x34] sm:$0xf]
        %v492 = vld [vmem:[#allocation7 + $0x38] sm:$0xf]
        %v493 = vld [vmem:[#allocation7 + $0x3c] sm:$0xf]
        %v494 = vld [vmem:[%s4] sm:$0x1]
        %v496 = vlaneseq
        %v497 = vshrl.u32 %v496, 7
        %v498 = vsub.s32 0, %v497
        %v499 = vrot.slane %v494, %v498
        %v517 = vunpack.c.l.b16 %v478
        %v518 = vunpack.c.l.b16 %v479
        %v519 = vunpack.c.l.b16 %v480
        %v520 = vunpack.c.l.b16 %v481
        %v521 = vunpack.c.l.b16 %v482
        %v522 = vunpack.c.l.b16 %v483
        %v523 = vunpack.c.l.b16 %v484
        %v524 = vunpack.c.l.b16 %v485
        %v525 = vunpack.c.l.b16 %v486
        %v526 = vunpack.c.l.b16 %v487
        %v527 = vunpack.c.l.b16 %v488
        %v528 = vunpack.c.l.b16 %v489
        %v529 = vunpack.c.l.b16 %v490
        %v530 = vunpack.c.l.b16 %v491
        %v531 = vunpack.c.l.b16 %v492
        %v532 = vunpack.c.l.b16 %v493
        %v533 = vpack.c.b16 %v518, %v517
        %v534 = vpack.c.b16 %v520, %v519
        %v535 = vpack.c.b16 %v522, %v521
        %v536 = vpack.c.b16 %v524, %v523
        %v537 = vpack.c.b16 %v526, %v525
        %v538 = vpack.c.b16 %v528, %v527
        %v539 = vpack.c.b16 %v530, %v529
        %v540 = vpack.c.b16 %v532, %v531
        %549 = vmatprep.subr.bf16.mxu0 0
        %550 = vmatpush1.bf16.msra.mxu0 %v540
        %551 = vmatprep.subr.bf16.mxu0 0
        %552 = vmatpush1.bf16.msra.mxu0 %v539
        %553 = vmatprep.subr.bf16.mxu0 0
        %554 = vmatpush1.bf16.msra.mxu0 %v538
        %555 = vmatprep.subr.bf16.mxu0 0
        %556 = vmatpush1.bf16.msra.mxu0 %v537
        %557 = vmatprep.subr.bf16.mxu0 0
        %558 = vmatpush1.bf16.msra.mxu0 %v536
        %559 = vmatprep.subr.bf16.mxu0 0
        %560 = vmatpush1.bf16.msra.mxu0 %v535
        %561 = vmatprep.subr.bf16.mxu0 0
        %562 = vmatpush1.bf16.msra.mxu0 %v534
        %563 = vmatprep.subr.bf16.mxu0 0
        %564 = vmatpush1.bf16.msra.mxu0 %v533
        %565 = vmatprep.subr.bf16.mxu0 0
        %566 = vmatpush2.bf16.msra.mxu0 0
        %567 = vmatprep.subr.bf16.mxu0 0
        %568 = vmatpush2.bf16.msra.mxu0 0
        %569 = vmatprep.subr.bf16.mxu0 0
        %570 = vmatpush2.bf16.msra.mxu0 0
        %571 = vmatprep.subr.bf16.mxu0 0
        %572 = vmatpush2.bf16.msra.mxu0 0
        %573 = vmatprep.subr.bf16.mxu0 0
        %574 = vmatpush2.bf16.msra.mxu0 0
        %575 = vmatprep.subr.bf16.mxu0 0
        %576 = vmatpush2.bf16.msra.mxu0 0
        %577 = vmatprep.subr.bf16.mxu0 0
        %578 = vmatpush2.bf16.msra.mxu0 0
        %579 = vmatprep.subr.bf16.mxu0 0
        %580 = vmatpush2.bf16.msra.mxu0 0
        %581 = vmatprep.mubr.bf16.mxu0 0
        %582 = vmatmul.mubr.bf16.gmra.mxu0 %v373
        %v583 = vpop.f32.mrf.mxu0
        %v584 = vadd.f32 %v499, %v583
        %v585 = vpop.f32.mrf.mxu0
        %v586 = vpop.f32.mrf.mxu0
        %v587 = vadd.f32 %v499, %v586
        %v588 = vpop.f32.mrf.mxu0
        %589 = vdwg.mxu0
        %v590 = vmul.f32 %v476, %v584
        %v591 = vmul.f32 %v477, %v587
        %v592 = vpack.c.bf16 %v591, %v590
        %v593 = vld [vmem:[#allocation8] sm:$0xf]
        %v594 = vld [vmem:[#allocation8 + $0x4] sm:$0xf]
        %v595 = vld [vmem:[#allocation8 + $0x8] sm:$0xf]
        %v596 = vld [vmem:[#allocation8 + $0xc] sm:$0xf]
        %v597 = vld [vmem:[#allocation8 + $0x10] sm:$0xf]
        %v598 = vld [vmem:[#allocation8 + $0x14] sm:$0xf]
        %v599 = vld [vmem:[#allocation8 + $0x18] sm:$0xf]
        %v600 = vld [vmem:[#allocation8 + $0x1c] sm:$0xf]
        %v601 = vld [vmem:[#allocation8 + $0x20] sm:$0xf]
        %v602 = vld [vmem:[#allocation8 + $0x24] sm:$0xf]
        %v603 = vld [vmem:[#allocation8 + $0x28] sm:$0xf]
        %v604 = vld [vmem:[#allocation8 + $0x2c] sm:$0xf]
        %v605 = vld [vmem:[#allocation8 + $0x30] sm:$0xf]
        %v606 = vld [vmem:[#allocation8 + $0x34] sm:$0xf]
        %v607 = vld [vmem:[#allocation8 + $0x38] sm:$0xf]
        %v608 = vld [vmem:[#allocation8 + $0x3c] sm:$0xf]
        %v609 = vld [vmem:[%s6] sm:$0x1]
        %v611 = vlaneseq
        %v612 = vshrl.u32 %v611, 7
        %v613 = vsub.s32 0, %v612
        %v614 = vrot.slane %v609, %v613
        %v632 = vunpack.c.l.b16 %v593
        %v633 = vunpack.c.l.b16 %v594
        %v634 = vunpack.c.l.b16 %v595
        %v635 = vunpack.c.l.b16 %v596
        %v636 = vunpack.c.l.b16 %v597
        %v637 = vunpack.c.l.b16 %v598
        %v638 = vunpack.c.l.b16 %v599
        %v639 = vunpack.c.l.b16 %v600
        %v640 = vunpack.c.l.b16 %v601
        %v641 = vunpack.c.l.b16 %v602
        %v642 = vunpack.c.l.b16 %v603
        %v643 = vunpack.c.l.b16 %v604
        %v644 = vunpack.c.l.b16 %v605
        %v645 = vunpack.c.l.b16 %v606
        %v646 = vunpack.c.l.b16 %v607
        %v647 = vunpack.c.l.b16 %v608
        %v648 = vpack.c.b16 %v633, %v632
        %v649 = vpack.c.b16 %v635, %v634
        %v650 = vpack.c.b16 %v637, %v636
        %v651 = vpack.c.b16 %v639, %v638
        %v652 = vpack.c.b16 %v641, %v640
        %v653 = vpack.c.b16 %v643, %v642
        %v654 = vpack.c.b16 %v645, %v644
        %v655 = vpack.c.b16 %v647, %v646
        %664 = vmatprep.subr.bf16.mxu0 0
        %665 = vmatpush1.bf16.msra.mxu0 %v655
        %666 = vmatprep.subr.bf16.mxu0 0
        %667 = vmatpush1.bf16.msra.mxu0 %v654
        %668 = vmatprep.subr.bf16.mxu0 0
        %669 = vmatpush1.bf16.msra.mxu0 %v653
        %670 = vmatprep.subr.bf16.mxu0 0
        %671 = vmatpush1.bf16.msra.mxu0 %v652
        %672 = vmatprep.subr.bf16.mxu0 0
        %673 = vmatpush1.bf16.msra.mxu0 %v651
        %674 = vmatprep.subr.bf16.mxu0 0
        %675 = vmatpush1.bf16.msra.mxu0 %v650
        %676 = vmatprep.subr.bf16.mxu0 0
        %677 = vmatpush1.bf16.msra.mxu0 %v649
        %678 = vmatprep.subr.bf16.mxu0 0
        %679 = vmatpush1.bf16.msra.mxu0 %v648
        %680 = vmatprep.subr.bf16.mxu0 0
        %681 = vmatpush2.bf16.msra.mxu0 0
        %682 = vmatprep.subr.bf16.mxu0 0
        %683 = vmatpush2.bf16.msra.mxu0 0
        %684 = vmatprep.subr.bf16.mxu0 0
        %685 = vmatpush2.bf16.msra.mxu0 0
        %686 = vmatprep.subr.bf16.mxu0 0
        %687 = vmatpush2.bf16.msra.mxu0 0
        %688 = vmatprep.subr.bf16.mxu0 0
        %689 = vmatpush2.bf16.msra.mxu0 0
        %690 = vmatprep.subr.bf16.mxu0 0
        %691 = vmatpush2.bf16.msra.mxu0 0
        %692 = vmatprep.subr.bf16.mxu0 0
        %693 = vmatpush2.bf16.msra.mxu0 0
        %694 = vmatprep.subr.bf16.mxu0 0
        %695 = vmatpush2.bf16.msra.mxu0 0
        %696 = vmatprep.mubr.bf16.mxu0 0
        %697 = vmatmul.mubr.bf16.gmra.mxu0 %v592
        %v698 = vpop.f32.mrf.mxu0
        %v699 = vadd.f32 %v614, %v698
        %v700 = vpop.f32.mrf.mxu0
        %v701 = vpop.f32.mrf.mxu0
        %v702 = vadd.f32 %v614, %v701
        %v703 = vpop.f32.mrf.mxu0
        %704 = vdwg.mxu0
        %705 = vst [vmem:[%s340] sm:$0xff] %v699
        %706 = vst [vmem:[%s340 + $0x8] sm:$0xff] %v702
        %s707 = sand.u32 %s186, 1
        %s708 = scalar_lea.sflag [#allocation4], %s707
        %s709 = sand.u32 %s186, 1
        %s710 = smul.addr %s709, 16
        %s711 = scalar_lea.vmem [#allocation10], %s710
        // Predicated region
        $region65: #{tpu_custom_call.1} parent=47 // pred_check
          %p712 = pneg %p196
        $region66: #{tpu_custom_call.1} parent=47 // pred_check_branch
          %714 = sbr.rel (%p712) target = $region68
        $region67: #{tpu_custom_call.1} parent=47 // pred_region
          %s715 = smul.u32 2, %s26
          %s717 = ssub.s32 256, 256
          %718 = vsyncadd %s708, %s717
          %s719 = smul.addr %s715, 128
          %s720 = scalar_lea.hbm %s7, %s719
          %s721 = sshll.u32 %s711, 4
          %s722 = int_to_ptr.vmem [resolvable:$true] %s721
          %727 = dma.vmem_to_hbm [thread:$0]  %s722, 256, %s720, %s708, 128, 128, 8
        $region68: #{tpu_custom_call.1} parent=47 // pred_fallthru
          _
      $region48: #{tpu_custom_call.1} parent=5 // pred_fallthru
        _
      %p728 = scmp.le.s32.totalorder 2, %s21
      // Predicated region
      $region69: #{tpu_custom_call.1} parent=5 // pred_check
        %p729 = pneg %p728
      $region70: #{tpu_custom_call.1} parent=5 // pred_check_branch
        %731 = sbr.rel (%p729) target = $region72
      $region71: #{tpu_custom_call.1} parent=5 // pred_region
        %s732 = ssub.s32 %s21, 2
        // Predicated region
        $region73: #{tpu_custom_call.1} parent=71 // pred_check
          %p733 = pneg %p202
        $region74: #{tpu_custom_call.1} parent=71 // pred_check_branch
          %735 = sbr.rel (%p733) target = $region76
        $region75: #{tpu_custom_call.1} parent=71 // pred_region
          %s736 = sand.u32 %s187, 1
          %s737 = scalar_lea.sflag [#allocation4], %s736
          %s738 = sand.u32 %s187, 1
          %s739 = smul.addr %s738, 16
          %s740 = scalar_lea.vmem [#allocation10], %s739
          %741 = dma.done %s737, 256
        $region76: #{tpu_custom_call.1} parent=71 // pred_fallthru
          _
      $region72: #{tpu_custom_call.1} parent=5 // pred_fallthru
        _
    $region6: #{tpu_custom_call.1} parent=1 // loop_footer
      %s25 = sadd.s32 1, %s21
    $region7: #{tpu_custom_call.1} parent=1 // loop_footer_branch
      %20 = sbr.rel target = $region3
    $region8: #{tpu_custom_call.1} parent=1 // loop_exit
      _
    %742 = vsyncpa [#allocation3], 1
    %s743 = scalar_lea.sflag [#allocation3], 1
    %744 = vsyncpa %s743, 1
    %745 = vsyncpa [#allocation6], 1
    %746 = vsyncpa [#allocation9], 1
    %747 = vsyncpa [#allocation4], 1
    %s748 = scalar_lea.sflag [#allocation4], 1
    %749 = vsyncpa %s748, 1

// kernel: tpu_custom_call.1
$region0: #{tpu_custom_call.1}
  #allocation0 [shape = 'u32[]', space=smem, size = 0x4, offset = 0x4, fixed_abs, tag = 'smem constant byte address 0x4 - core index']
  #allocation1 [shape = 'u32[144,128]{1,0:T(1,128)}', space=vmem, size = 0x12000, scoped, tag = 'internal scratch']
  %s0 = inlined_call_operand.hbm [shape: bf16[32,128], index: 0, kind: input, shape index: {}]
  %s1 = inlined_call_operand.hbm [shape: bf16[128,128], index: 1, kind: input, shape index: {}]
  %s2 = inlined_call_operand.vmem [shape: f32[1,128], index: 2, kind: input, shape index: {}]
  %s3 = inlined_call_operand.hbm [shape: bf16[128,128], index: 3, kind: input, shape index: {}]
  %s4 = inlined_call_operand.vmem [shape: f32[1,128], index: 4, kind: input, shape index: {}]
  %s5 = inlined_call_operand.hbm [shape: bf16[128,128], index: 5, kind: input, shape index: {}]
  %s6 = inlined_call_operand.vmem [shape: f32[1,128], index: 6, kind: input, shape index: {}]
  %s7 = inlined_call_operand.hbm [shape: f32[32,128], index: 7, kind: output, shape index: {}]
  %s8 = sld [smem:[#allocation0]]
  $region77: #{tpu_custom_call.1} parent=0
    _
  %s10 = ssub.s32 1, %s8
  %s11 = scalar_select 0, %s10, %s8
  $region1: #{tpu_custom_call.1} parent=0
    #allocation2 [shape = 'u8[8192]{0}', space=vmem, size = 0x2000, scoped, tag = 'input window, operand 0']
    #allocation3 [shape = 's32[2]{0}', space=sflag, size = 0x8, scoped, tag = 'scoped memory for tpu_custom_call.1']
    #allocation4 [shape = 's32[2]{0}', space=sflag, size = 0x8, scoped, tag = 'scoped memory for tpu_custom_call.1']
    #allocation5 [shape = 'u8[32768]{0}', space=vmem, size = 0x8000, scoped, tag = 'input window, operand 1, single buffered']
    #allocation6 [shape = 's32[1]{0}', space=sflag, size = 0x4, scoped, tag = 'scoped memory for tpu_custom_call.1']
    #allocation7 [shape = 'u8[32768]{0}', space=vmem, size = 0x8000, scoped, tag = 'input window, operand 3, single buffered']
    #allocation8 [shape = 'u8[32768]{0}', space=vmem, size = 0x8000, scoped, tag = 'input window, operand 5, single buffered']
    #allocation9 [shape = 's32[1]{0}', space=sflag, size = 0x4, scoped, tag = 'scoped memory for tpu_custom_call.1']
    #allocation10 [shape = 'u8[16384]{0}', space=vmem, size = 0x4000, scoped, tag = 'output window, operand 0']
    %12 = vsyncpa [#allocation3], 0
    %s13 = scalar_lea.sflag [#allocation3], 1
    %14 = vsyncpa %s13, 0
    %15 = vsyncpa [#allocation6], 0
    %16 = vsyncpa [#allocation9], 0
    %17 = vsyncpa [#allocation4], 0
    %s18 = scalar_lea.sflag [#allocation4], 1
    %19 = vsyncpa %s18, 0
    loop: start=0, step=1, limit=4
    $region2: #{tpu_custom_call.1} parent=1 // loop_pre_header
      _
    $region3: #{tpu_custom_call.1} parent=1 // loop_header
      %s21 = sphi 0, %s25
      %p22 = scmp.ge.s32.totalorder %s21, 4
      %s31 = sphi 0, %s33
      %s34 = sphi 0, %s31
      %s35 = sphi 0, %s34
      %s51 = sphi 0, %s35
      %s55 = sphi 0, %s55
      %s57 = sphi 0, %s55
      %s58 = sphi 0, %s57
      %s72 = sphi 0, %s58
      %s76 = sphi 0, %s76
      %s78 = sphi 0, %s76
      %s79 = sphi 0, %s78
      %s93 = sphi 0, %s79
      %s97 = sphi 0, %s97
      %s99 = sphi 0, %s97
      %s100 = sphi 0, %s99
      %s114 = sphi 0, %s100
      %s118 = sphi 0, %s118
      %s120 = sphi 0, %s118
      %s121 = sphi 0, %s120
      %s135 = sphi 0, %s121
      %s139 = sphi 0, %s139
      %s141 = sphi 0, %s139
      %s142 = sphi 0, %s141
      %s156 = sphi 0, %s142
      %s160 = sphi 0, %s160
      %s162 = sphi 0, %s160
      %s163 = sphi 0, %s162
      %s177 = sphi 0, %s163
      %s183 = sphi 0, %s185
      %s186 = sphi 0, %s183
      %s187 = sphi 0, %s186
      %s203 = sphi 0, %s187
    $region4: #{tpu_custom_call.1} parent=1 // loop_header_branch
      %24 = sbr.rel (%p22) target = $region8
    $region5: #{tpu_custom_call.1} parent=1 // loop_body
      %s26 = ssub.s32 %s21, 1
      %s27 = ssub.s32 %s21, 2
      %s28 = sadd.s32 %s21, 1
      %s29 = ssub.s32 %s21, %s28
      %p30 = scmp.eq.s32.totalorder %s29, 0
      %s32 = sadd.s32 %s31, 1
      %s33 = scalar_select %p30, %s31, %s32
      %p36 = pneg %p30
      %p37 = scmp.eq.s32.totalorder %s21, 1
      %p38 = por %p36, %p37
      %p39 = scmp.ne.s32.totalorder %s31, %s34
      %p40 = scmp.eq.s32.totalorder %s21, 0
      %p41 = por %p39, %p40
      %p42 = scmp.ne.s32.totalorder %s31, %s34
      %p43 = scmp.eq.s32.totalorder %s26, 1
      %p44 = por %p42, %p43
      %p45 = scmp.ne.s32.totalorder %s34, %s35
      %p46 = scmp.eq.s32.totalorder %s26, 0
      %p47 = por %p45, %p46
      %p48 = scmp.ne.s32.totalorder %s34, %s35
      %p49 = scmp.eq.s32.totalorder %s27, 1
      %p50 = por %p48, %p49
      %p52 = scmp.ne.s32.totalorder %s35, %s51
      %p53 = scmp.eq.s32.totalorder %s27, 0
      %p54 = por %p52, %p53
      %s56 = sadd.s32 %s55, 1
      %p59 = scmp.eq.s32.totalorder %s21, 1
      %p60 = scmp.ne.s32.totalorder %s55, %s57
      %p61 = scmp.eq.s32.totalorder %s21, 0
      %p62 = por %p60, %p61
      %p63 = scmp.ne.s32.totalorder %s55, %s57
      %p64 = scmp.eq.s32.totalorder %s26, 1
      %p65 = por %p63, %p64
      %p66 = scmp.ne.s32.totalorder %s57, %s58
      %p67 = scmp.eq.s32.totalorder %s26, 0
      %p68 = por %p66, %p67
      %p69 = scmp.ne.s32.totalorder %s57, %s58
      %p70 = scmp.eq.s32.totalorder %s27, 1
      %p71 = por %p69, %p70
      %p73 = scmp.ne.s32.totalorder %s58, %s72
      %p74 = scmp.eq.s32.totalorder %s27, 0
      %p75 = por %p73, %p74
      %s77 = sadd.s32 %s76, 1
      %p80 = scmp.eq.s32.totalorder %s21, 1
      %p81 = scmp.ne.s32.totalorder %s76, %s78
      %p82 = scmp.eq.s32.totalorder %s21, 0
      %p83 = por %p81, %p82
      %p84 = scmp.ne.s32.totalorder %s76, %s78
      %p85 = scmp.eq.s32.totalorder %s26, 1
      %p86 = por %p84, %p85
      %p87 = scmp.ne.s32.totalorder %s78, %s79
      %p88 = scmp.eq.s32.totalorder %s26, 0
      %p89 = por %p87, %p88
      %p90 = scmp.ne.s32.totalorder %s78, %s79
      %p91 = scmp.eq.s32.totalorder %s27, 1
      %p92 = por %p90, %p91
      %p94 = scmp.ne.s32.totalorder %s79, %s93
      %p95 = scmp.eq.s32.totalorder %s27, 0
      %p96 = por %p94, %p95
      %s98 = sadd.s32 %s97, 1
      %p101 = scmp.eq.s32.totalorder %s21, 1
      %p102 = scmp.ne.s32.totalorder %s97, %s99
      %p103 = scmp.eq.s32.totalorder %s21, 0
      %p104 = por %p102, %p103
      %p105 = scmp.ne.s32.totalorder %s97, %s99
      %p106 = scmp.eq.s32.totalorder %s26, 1
      %p107 = por %p105, %p106
      %p108 = scmp.ne.s32.totalorder %s99, %s100
      %p109 = scmp.eq.s32.totalorder %s26, 0
      %p110 = por %p108, %p109
      %p111 = scmp.ne.s32.totalorder %s99, %s100
      %p112 = scmp.eq.s32.totalorder %s27, 1
      %p113 = por %p111, %p112
      %p115 = scmp.ne.s32.totalorder %s100, %s114
      %p116 = scmp.eq.s32.totalorder %s27, 0
      %p117 = por %p115, %p116
      %s119 = sadd.s32 %s118, 1
      %p122 = scmp.eq.s32.totalorder %s21, 1
      %p123 = scmp.ne.s32.totalorder %s118, %s120
      %p124 = scmp.eq.s32.totalorder %s21, 0
      %p125 = por %p123, %p124
      %p126 = scmp.ne.s32.totalorder %s118, %s120
      %p127 = scmp.eq.s32.totalorder %s26, 1
      %p128 = por %p126, %p127
      %p129 = scmp.ne.s32.totalorder %s120, %s121
      %p130 = scmp.eq.s32.totalorder %s26, 0
      %p131 = por %p129, %p130
      %p132 = scmp.ne.s32.totalorder %s120, %s121
      %p133 = scmp.eq.s32.totalorder %s27, 1
      %p134 = por %p132, %p133
      %p136 = scmp.ne.s32.totalorder %s121, %s135
      %p137 = scmp.eq.s32.totalorder %s27, 0
      %p138 = por %p136, %p137
      %s140 = sadd.s32 %s139, 1
      %p143 = scmp.eq.s32.totalorder %s21, 1
      %p144 = scmp.ne.s32.totalorder %s139, %s141
      %p145 = scmp.eq.s32.totalorder %s21, 0
      %p146 = por %p144, %p145
      %p147 = scmp.ne.s32.totalorder %s139, %s141
      %p148 = scmp.eq.s32.totalorder %s26, 1
      %p149 = por %p147, %p148
      %p150 = scmp.ne.s32.totalorder %s141, %s142
      %p151 = scmp.eq.s32.totalorder %s26, 0
      %p152 = por %p150, %p151
      %p153 = scmp.ne.s32.totalorder %s141, %s142
      %p154 = scmp.eq.s32.totalorder %s27, 1
      %p155 = por %p153, %p154
      %p157 = scmp.ne.s32.totalorder %s142, %s156
      %p158 = scmp.eq.s32.totalorder %s27, 0
      %p159 = por %p157, %p158
      %s161 = sadd.s32 %s160, 1
      %p164 = scmp.eq.s32.totalorder %s21, 1
      %p165 = scmp.ne.s32.totalorder %s160, %s162
      %p166 = scmp.eq.s32.totalorder %s21, 0
      %p167 = por %p165, %p166
      %p168 = scmp.ne.s32.totalorder %s160, %s162
      %p169 = scmp.eq.s32.totalorder %s26, 1
      %p170 = por %p168, %p169
      %p171 = scmp.ne.s32.totalorder %s162, %s163
      %p172 = scmp.eq.s32.totalorder %s26, 0
      %p173 = por %p171, %p172
      %p174 = scmp.ne.s32.totalorder %s162, %s163
      %p175 = scmp.eq.s32.totalorder %s27, 1
      %p176 = por %p174, %p175
      %p178 = scmp.ne.s32.totalorder %s163, %s177
      %p179 = scmp.eq.s32.totalorder %s27, 0
      %p180 = por %p178, %p179
      %s181 = ssub.s32 %s21, %s28
      %p182 = scmp.eq.s32.totalorder %s181, 0
      %s184 = sadd.s32 %s183, 1
      %s185 = scalar_select %p182, %s183, %s184
      %p188 = pneg %p182
      %p189 = scmp.eq.s32.totalorder %s21, 1
      %p190 = por %p188, %p189
      %p191 = scmp.ne.s32.totalorder %s183, %s186
      %p192 = scmp.eq.s32.totalorder %s21, 0
      %p193 = por %p191, %p192
      %p194 = scmp.ne.s32.totalorder %s183, %s186
      %p195 = scmp.eq.s32.totalorder %s26, 1
      %p196 = por %p194, %p195
      %p197 = scmp.ne.s32.totalorder %s186, %s187
      %p198 = scmp.eq.s32.totalorder %s26, 0
      %p199 = por %p197, %p198
      %p200 = scmp.ne.s32.totalorder %s186, %s187
      %p201 = scmp.eq.s32.totalorder %s27, 1
      %p202 = por %p200, %p201
      %p204 = scmp.ne.s32.totalorder %s187, %s203
      %p205 = scmp.eq.s32.totalorder %s27, 0
      %p206 = por %p204, %p205
      %p207 = scmp.le.s32.totalorder 1, %s21
      %p208 = scmp.lt.s32.totalorder %s21, 3
      %p209 = pnand %p207, %p208
      %p210 = pneg %p209
      // Predicated region
      $region9: #{tpu_custom_call.1} parent=5 // pred_check
        _
      $region10: #{tpu_custom_call.1} parent=5 // pred_check_branch
        %212 = sbr.rel (%p209) target = $region12
      $region11: #{tpu_custom_call.1} parent=5 // pred_region
        %s213 = ssub.s32 %s21, 1
        // Predicated region
        $region13: #{tpu_custom_call.1} parent=11 // pred_check
          %p214 = pneg %p68
        $region14: #{tpu_custom_call.1} parent=11 // pred_check_branch
          %216 = sbr.rel (%p214) target = $region16
        $region15: #{tpu_custom_call.1} parent=11 // pred_region
          %s218 = ssub.s32 1024, 1024
          %219 = vsyncadd [#allocation6], %s218
          %s220 = sshll.u32 [#allocation5], 4
          %s221 = int_to_ptr.vmem [resolvable:$true] %s220
          %226 = dma.hbm_to_vmem [thread:$0]  %s1, 1024, %s221, [#allocation6], 64, 64, 4
        $region16: #{tpu_custom_call.1} parent=11 // pred_fallthru
          _
        // Predicated region
        $region17: #{tpu_custom_call.1} parent=11 // pred_check
          %p227 = pneg %p89
        $region18: #{tpu_custom_call.1} parent=11 // pred_check_branch
          %229 = sbr.rel (%p227) target = $region20
        $region19: #{tpu_custom_call.1} parent=11 // pred_region
          _
        $region20: #{tpu_custom_call.1} parent=11 // pred_fallthru
          _
        // Predicated region
        $region21: #{tpu_custom_call.1} parent=11 // pred_check
          %p230 = pneg %p110
        $region22: #{tpu_custom_call.1} parent=11 // pred_check_branch
          %232 = sbr.rel (%p230) target = $region24
        $region23: #{tpu_custom_call.1} parent=11 // pred_region
          %s234 = ssub.s32 1024, 1024
          %235 = vsyncadd [#allocation6], %s234
          %s236 = sshll.u32 [#allocation7], 4
          %s237 = int_to_ptr.vmem [resolvable:$true] %s236
          %242 = dma.hbm_to_vmem [thread:$0]  %s3, 1024, %s237, [#allocation6], 64, 64, 4
        $region24: #{tpu_custom_call.1} parent=11 // pred_fallthru
          _
        // Predicated region
        $region25: #{tpu_custom_call.1} parent=11 // pred_check
          %p243 = pneg %p131
        $region26: #{tpu_custom_call.1} parent=11 // pred_check_branch
          %245 = sbr.rel (%p243) target = $region28
        $region27: #{tpu_custom_call.1} parent=11 // pred_region
          _
        $region28: #{tpu_custom_call.1} parent=11 // pred_fallthru
          _
        // Predicated region
        $region29: #{tpu_custom_call.1} parent=11 // pred_check
          %p246 = pneg %p152
        $region30: #{tpu_custom_call.1} parent=11 // pred_check_branch
          %248 = sbr.rel (%p246) target = $region32
        $region31: #{tpu_custom_call.1} parent=11 // pred_region
          %s250 = ssub.s32 1024, 1024
          %251 = vsyncadd [#allocation9], %s250
          %s252 = sshll.u32 [#allocation8], 4
          %s253 = int_to_ptr.vmem [resolvable:$true] %s252
          %258 = dma.hbm_to_vmem [thread:$0]  %s5, 1024, %s253, [#allocation9], 64, 64, 4
        $region32: #{tpu_custom_call.1} parent=11 // pred_fallthru
          _
        // Predicated region
        $region33: #{tpu_custom_call.1} parent=11 // pred_check
          %p259 = pneg %p173
        $region34: #{tpu_custom_call.1} parent=11 // pred_check_branch
          %261 = sbr.rel (%p259) target = $region36
        $region35: #{tpu_custom_call.1} parent=11 // pred_region
          _
        $region36: #{tpu_custom_call.1} parent=11 // pred_fallthru
          _
      $region12: #{tpu_custom_call.1} parent=5 // pred_fallthru
        _
      %p262 = scmp.lt.s32.totalorder %s21, 2
      // Predicated region
      $region37: #{tpu_custom_call.1} parent=5 // pred_check
        %p263 = pneg %p262
      $region38: #{tpu_custom_call.1} parent=5 // pred_check_branch
        %265 = sbr.rel (%p263) target = $region40
      $region39: #{tpu_custom_call.1} parent=5 // pred_region
        // Predicated region
        $region41: #{tpu_custom_call.1} parent=39 // pred_check
          %p266 = pneg %p41
        $region42: #{tpu_custom_call.1} parent=39 // pred_check_branch
          %268 = sbr.rel (%p266) target = $region44
        $region43: #{tpu_custom_call.1} parent=39 // pred_region
          %s269 = sand.u32 %s31, 1
          %s270 = scalar_lea.sflag [#allocation3], %s269
          %s271 = sand.u32 %s31, 1
          %s272 = smul.addr %s271, 8
          %s273 = scalar_lea.vmem [#allocation2], %s272
          %s274 = smul.u32 2, %s21
          %s276 = ssub.s32 128, 128
          %277 = vsyncadd %s270, %s276
          %s278 = smul.addr %s274, 64
          %s279 = scalar_lea.hbm %s0, %s278
          %s280 = sshll.u32 %s273, 4
          %s281 = int_to_ptr.vmem [resolvable:$true] %s280
          %286 = dma.hbm_to_vmem [thread:$0]  %s279, 128, %s281, %s270, 64, 64, 4
        $region44: #{tpu_custom_call.1} parent=39 // pred_fallthru
          _
      $region40: #{tpu_custom_call.1} parent=5 // pred_fallthru
        _
      %p287 = scmp.le.s32.totalorder 1, %s21
      %p288 = scmp.lt.s32.totalorder %s21, 3
      %p289 = pnand %p287, %p288
      %p290 = pneg %p289
      // Predicated region
      $region45: #{tpu_custom_call.1} parent=5 // pred_check
        _
      $region46: #{tpu_custom_call.1} parent=5 // pred_check_branch
        %292 = sbr.rel (%p289) target = $region48
      $region47: #{tpu_custom_call.1} parent=5 // pred_region
        %s293 = ssub.s32 %s21, 1
        %s294 = sand.u32 %s34, 1
        %s295 = scalar_lea.sflag [#allocation3], %s294
        %s296 = sand.u32 %s34, 1
        %s297 = smul.addr %s296, 8
        %s298 = scalar_lea.vmem [#allocation2], %s297
        // Predicated region
        $region49: #{tpu_custom_call.1} parent=47 // pred_check
          %p299 = pneg %p47
        $region50: #{tpu_custom_call.1} parent=47 // pred_check_branch
          %301 = sbr.rel (%p299) target = $region52
        $region51: #{tpu_custom_call.1} parent=47 // pred_region
          %302 = dma.done %s295, 128
        $region52: #{tpu_custom_call.1} parent=47 // pred_fallthru
          _
        // Predicated region
        $region53: #{tpu_custom_call.1} parent=47 // pred_check
          %p303 = pneg %p68
        $region54: #{tpu_custom_call.1} parent=47 // pred_check_branch
          %305 = sbr.rel (%p303) target = $region56
        $region55: #{tpu_custom_call.1} parent=47 // pred_region
          %306 = dma.done [#allocation6], 1024
        $region56: #{tpu_custom_call.1} parent=47 // pred_fallthru
          _
        // Predicated region
        $region57: #{tpu_custom_call.1} parent=47 // pred_check
          %p307 = pneg %p110
        $region58: #{tpu_custom_call.1} parent=47 // pred_check_branch
          %309 = sbr.rel (%p307) target = $region60
        $region59: #{tpu_custom_call.1} parent=47 // pred_region
          %310 = dma.done [#allocation6], 1024
        $region60: #{tpu_custom_call.1} parent=47 // pred_fallthru
          _
        // Predicated region
        $region61: #{tpu_custom_call.1} parent=47 // pred_check
          %p311 = pneg %p152
        $region62: #{tpu_custom_call.1} parent=47 // pred_check_branch
          %313 = sbr.rel (%p311) target = $region64
        $region63: #{tpu_custom_call.1} parent=47 // pred_region
          %314 = dma.done [#allocation9], 1024
        $region64: #{tpu_custom_call.1} parent=47 // pred_fallthru
          _
        %s315 = sand.u32 %s34, 1
        %s316 = scalar_lea.sflag [#allocation3], %s315
        %s317 = sand.u32 %s34, 1
        %s318 = smul.addr %s317, 8
        %s319 = scalar_lea.vmem [#allocation2], %s318
        %p320 = pneg %p47
        %p321 = pneg %p44
        %p322 = pneg %p68
        %p323 = pneg %p65
        %p324 = pneg %p89
        %p325 = pneg %p86
        %p326 = pneg %p110
        %p327 = pneg %p107
        %p328 = pneg %p131
        %p329 = pneg %p128
        %p330 = pneg %p152
        %p331 = pneg %p149
        %p332 = pneg %p173
        %p333 = pneg %p170
        %p334 = pneg %p199
        %p335 = pneg %p196
        %s336 = sand.u32 %s186, 1
        %s337 = scalar_lea.sflag [#allocation4], %s336
        %s338 = sand.u32 %s186, 1
        %s339 = smul.addr %s338, 16
        %s340 = scalar_lea.vmem [#allocation10], %s339
        %s341 = smul.u32 2, %s26
        %s342 = smul.u32 2, %s26
        %v344 = vld [vmem:[%s298] sm:$0xf]
        %v345 = vld [vmem:[%s298 + $0x4] sm:$0xf]
        %v346 = vld [vmem:[#allocation5] sm:$0xf]
        %v347 = vld [vmem:[#allocation5 + $0x4] sm:$0xf]
        %v348 = vld [vmem:[#allocation5 + $0x8] sm:$0xf]
        %v349 = vld [vmem:[#allocation5 + $0xc] sm:$0xf]
        %v350 = vld [vmem:[#allocation5 + $0x10] sm:$0xf]
        %v351 = vld [vmem:[#allocation5 + $0x14] sm:$0xf]
        %v352 = vld [vmem:[#allocation5 + $0x18] sm:$0xf]
        %v353 = vld [vmem:[#allocation5 + $0x1c] sm:$0xf]
        %v354 = vld [vmem:[#allocation5 + $0x20] sm:$0xf]
        %v355 = vld [vmem:[#allocation5 + $0x24] sm:$0xf]
        %v356 = vld [vmem:[#allocation5 + $0x28] sm:$0xf]
        %v357 = vld [vmem:[#allocation5 + $0x2c] sm:$0xf]
        %v358 = vld [vmem:[#allocation5 + $0x30] sm:$0xf]
        %v359 = vld [vmem:[#allocation5 + $0x34] sm:$0xf]
        %v360 = vld [vmem:[#allocation5 + $0x38] sm:$0xf]
        %v361 = vld [vmem:[#allocation5 + $0x3c] sm:$0xf]
        %v362 = vld [vmem:[%s2] sm:$0x1]
        %v364 = vlaneseq
        %v365 = vshrl.u32 %v364, 7
        %v366 = vsub.s32 0, %v365
        %v367 = vrot.slane %v362, %v366
        %v371 = vunpack.c.l.b16 %v344
        %v372 = vunpack.c.l.b16 %v345
        %v373 = vpack.c.b16 %v372, %v371
        %v391 = vunpack.c.l.b16 %v346
        %v392 = vunpack.c.l.b16 %v347
        %v393 = vunpack.c.l.b16 %v348
        %v394 = vunpack.c.l.b16 %v349
        %v395 = vunpack.c.l.b16 %v350
        %v396 = vunpack.c.l.b16 %v351
        %v397 = vunpack.c.l.b16 %v352
        %v398 = vunpack.c.l.b16 %v353
        %v399 = vunpack.c.l.b16 %v354
        %v400 = vunpack.c.l.b16 %v355
        %v401 = vunpack.c.l.b16 %v356
        %v402 = vunpack.c.l.b16 %v357
        %v403 = vunpack.c.l.b16 %v358
        %v404 = vunpack.c.l.b16 %v359
        %v405 = vunpack.c.l.b16 %v360
        %v406 = vunpack.c.l.b16 %v361
        %v407 = vpack.c.b16 %v392, %v391
        %v408 = vpack.c.b16 %v394, %v393
        %v409 = vpack.c.b16 %v396, %v395
        %v410 = vpack.c.b16 %v398, %v397
        %v411 = vpack.c.b16 %v400, %v399
        %v412 = vpack.c.b16 %v402, %v401
        %v413 = vpack.c.b16 %v404, %v403
        %v414 = vpack.c.b16 %v406, %v405
        %423 = vmatprep.subr.bf16.mxu0 0
        %424 = vmatpush1.bf16.msra.mxu0 %v414
        %425 = vmatprep.subr.bf16.mxu0 0
        %426 = vmatpush1.bf16.msra.mxu0 %v413
        %427 = vmatprep.subr.bf16.mxu0 0
        %428 = vmatpush1.bf16.msra.mxu0 %v412
        %429 = vmatprep.subr.bf16.mxu0 0
        %430 = vmatpush1.bf16.msra.mxu0 %v411
        %431 = vmatprep.subr.bf16.mxu0 0
        %432 = vmatpush1.bf16.msra.mxu0 %v410
        %433 = vmatprep.subr.bf16.mxu0 0
        %434 = vmatpush1.bf16.msra.mxu0 %v409
        %435 = vmatprep.subr.bf16.mxu0 0
        %436 = vmatpush1.bf16.msra.mxu0 %v408
        %437 = vmatprep.subr.bf16.mxu0 0
        %438 = vmatpush1.bf16.msra.mxu0 %v407
        %439 = vmatprep.subr.bf16.mxu0 0
        %440 = vmatpush2.bf16.msra.mxu0 0
        %441 = vmatprep.subr.bf16.mxu0 0
        %442 = vmatpush2.bf16.msra.mxu0 0
        %443 = vmatprep.subr.bf16.mxu0 0
        %444 = vmatpush2.bf16.msra.mxu0 0
        %445 = vmatprep.subr.bf16.mxu0 0
        %446 = vmatpush2.bf16.msra.mxu0 0
        %447 = vmatprep.subr.bf16.mxu0 0
        %448 = vmatpush2.bf16.msra.mxu0 0
        %449 = vmatprep.subr.bf16.mxu0 0
        %450 = vmatpush2.bf16.msra.mxu0 0
        %451 = vmatprep.subr.bf16.mxu0 0
        %452 = vmatpush2.bf16.msra.mxu0 0
        %453 = vmatprep.subr.bf16.mxu0 0
        %454 = vmatpush2.bf16.msra.mxu0 0
        %455 = vmatprep.mubr.bf16.mxu0 0
        %456 = vmatmul.mubr.bf16.gmra.mxu0 %v373
        %v457 = vpop.f32.mrf.mxu0
        %v458 = vadd.f32 %v367, %v457
        %v459 = vpop.f32.mrf.mxu0
        %v460 = vpop.f32.mrf.mxu0
        %v461 = vadd.f32 %v367, %v460
        %v462 = vpop.f32.mrf.mxu0
        %463 = vdwg.mxu0
        %v464 = vxor.u32 %v458, 2147483648
        %v465 = vxor.u32 %v461, 2147483648
        %v466 = vmul.f32 %v464, 1.442695
        %v467 = vpow.pop %v466
        %v468 = vmul.f32 %v465, 1.442695
        %v469 = vpow.pop %v468
        %v470 = vadd.f32 %v467, 1.0
        %v471 = vadd.f32 %v469, 1.0
        %v472 = vrcp.pop %v470
        %v473 = vmul.f32 1.0, %v472
        %v474 = vrcp.pop %v471
        %v475 = vmul.f32 1.0, %v474
        %v476 = vmul.f32 %v458, %v473
        %v477 = vmul.f32 %v461, %v475
        %v478 = vld [vmem:[#allocation7] sm:$0xf]
        %v479 = vld [vmem:[#allocation7 + $0x4] sm:$0xf]
        %v480 = vld [vmem:[#allocation7 + $0x8] sm:$0xf]
        %v481 = vld [vmem:[#allocation7 + $0xc] sm:$0xf]
        %v482 = vld [vmem:[#allocation7 + $0x10] sm:$0xf]
        %v483 = vld [vmem:[#allocation7 + $0x14] sm:$0xf]
        %v484 = vld [vmem:[#allocation7 + $0x18] sm:$0xf]
        %v485 = vld [vmem:[#allocation7 + $0x1c] sm:$0xf]
        %v486 = vld [vmem:[#allocation7 + $0x20] sm:$0xf]
        %v487 = vld [vmem:[#allocation7 + $0x24] sm:$0xf]
        %v488 = vld [vmem:[#allocation7 + $0x28] sm:$0xf]
        %v489 = vld [vmem:[#allocation7 + $0x2c] sm:$0xf]
        %v490 = vld [vmem:[#allocation7 + $0x30] sm:$0xf]
        %v491 = vld [vmem:[#allocation7 + $0x34] sm:$0xf]
        %v492 = vld [vmem:[#allocation7 + $0x38] sm:$0xf]
        %v493 = vld [vmem:[#allocation7 + $0x3c] sm:$0xf]
        %v494 = vld [vmem:[%s4] sm:$0x1]
        %v496 = vlaneseq
        %v497 = vshrl.u32 %v496, 7
        %v498 = vsub.s32 0, %v497
        %v499 = vrot.slane %v494, %v498
        %v517 = vunpack.c.l.b16 %v478
        %v518 = vunpack.c.l.b16 %v479
        %v519 = vunpack.c.l.b16 %v480
        %v520 = vunpack.c.l.b16 %v481
        %v521 = vunpack.c.l.b16 %v482
        %v522 = vunpack.c.l.b16 %v483
        %v523 = vunpack.c.l.b16 %v484
        %v524 = vunpack.c.l.b16 %v485
        %v525 = vunpack.c.l.b16 %v486
        %v526 = vunpack.c.l.b16 %v487
        %v527 = vunpack.c.l.b16 %v488
        %v528 = vunpack.c.l.b16 %v489
        %v529 = vunpack.c.l.b16 %v490
        %v530 = vunpack.c.l.b16 %v491
        %v531 = vunpack.c.l.b16 %v492
        %v532 = vunpack.c.l.b16 %v493
        %v533 = vpack.c.b16 %v518, %v517
        %v534 = vpack.c.b16 %v520, %v519
        %v535 = vpack.c.b16 %v522, %v521
        %v536 = vpack.c.b16 %v524, %v523
        %v537 = vpack.c.b16 %v526, %v525
        %v538 = vpack.c.b16 %v528, %v527
        %v539 = vpack.c.b16 %v530, %v529
        %v540 = vpack.c.b16 %v532, %v531
        %549 = vmatprep.subr.bf16.mxu0 0
        %550 = vmatpush1.bf16.msra.mxu0 %v540
        %551 = vmatprep.subr.bf16.mxu0 0
        %552 = vmatpush1.bf16.msra.mxu0 %v539
        %553 = vmatprep.subr.bf16.mxu0 0
        %554 = vmatpush1.bf16.msra.mxu0 %v538
        %555 = vmatprep.subr.bf16.mxu0 0
        %556 = vmatpush1.bf16.msra.mxu0 %v537
        %557 = vmatprep.subr.bf16.mxu0 0
        %558 = vmatpush1.bf16.msra.mxu0 %v536
        %559 = vmatprep.subr.bf16.mxu0 0
        %560 = vmatpush1.bf16.msra.mxu0 %v535
        %561 = vmatprep.subr.bf16.mxu0 0
        %562 = vmatpush1.bf16.msra.mxu0 %v534
        %563 = vmatprep.subr.bf16.mxu0 0
        %564 = vmatpush1.bf16.msra.mxu0 %v533
        %565 = vmatprep.subr.bf16.mxu0 0
        %566 = vmatpush2.bf16.msra.mxu0 0
        %567 = vmatprep.subr.bf16.mxu0 0
        %568 = vmatpush2.bf16.msra.mxu0 0
        %569 = vmatprep.subr.bf16.mxu0 0
        %570 = vmatpush2.bf16.msra.mxu0 0
        %571 = vmatprep.subr.bf16.mxu0 0
        %572 = vmatpush2.bf16.msra.mxu0 0
        %573 = vmatprep.subr.bf16.mxu0 0
        %574 = vmatpush2.bf16.msra.mxu0 0
        %575 = vmatprep.subr.bf16.mxu0 0
        %576 = vmatpush2.bf16.msra.mxu0 0
        %577 = vmatprep.subr.bf16.mxu0 0
        %578 = vmatpush2.bf16.msra.mxu0 0
        %579 = vmatprep.subr.bf16.mxu0 0
        %580 = vmatpush2.bf16.msra.mxu0 0
        %581 = vmatprep.mubr.bf16.mxu0 0
        %582 = vmatmul.mubr.bf16.gmra.mxu0 %v373
        %v583 = vpop.f32.mrf.mxu0
        %v584 = vadd.f32 %v499, %v583
        %v585 = vpop.f32.mrf.mxu0
        %v586 = vpop.f32.mrf.mxu0
        %v587 = vadd.f32 %v499, %v586
        %v588 = vpop.f32.mrf.mxu0
        %589 = vdwg.mxu0
        %v590 = vmul.f32 %v476, %v584
        %v591 = vmul.f32 %v477, %v587
        %v592 = vpack.c.bf16 %v591, %v590
        %v593 = vld [vmem:[#allocation8] sm:$0xf]
        %v594 = vld [vmem:[#allocation8 + $0x4] sm:$0xf]
        %v595 = vld [vmem:[#allocation8 + $0x8] sm:$0xf]
        %v596 = vld [vmem:[#allocation8 + $0xc] sm:$0xf]
        %v597 = vld [vmem:[#allocation8 + $0x10] sm:$0xf]
        %v598 = vld [vmem:[#allocation8 + $0x14] sm:$0xf]
        %v599 = vld [vmem:[#allocation8 + $0x18] sm:$0xf]
        %v600 = vld [vmem:[#allocation8 + $0x1c] sm:$0xf]
        %v601 = vld [vmem:[#allocation8 + $0x20] sm:$0xf]
        %v602 = vld [vmem:[#allocation8 + $0x24] sm:$0xf]
        %v603 = vld [vmem:[#allocation8 + $0x28] sm:$0xf]
        %v604 = vld [vmem:[#allocation8 + $0x2c] sm:$0xf]
        %v605 = vld [vmem:[#allocation8 + $0x30] sm:$0xf]
        %v606 = vld [vmem:[#allocation8 + $0x34] sm:$0xf]
        %v607 = vld [vmem:[#allocation8 + $0x38] sm:$0xf]
        %v608 = vld [vmem:[#allocation8 + $0x3c] sm:$0xf]
        %v609 = vld [vmem:[%s6] sm:$0x1]
        %v611 = vlaneseq
        %v612 = vshrl.u32 %v611, 7
        %v613 = vsub.s32 0, %v612
        %v614 = vrot.slane %v609, %v613
        %v632 = vunpack.c.l.b16 %v593
        %v633 = vunpack.c.l.b16 %v594
        %v634 = vunpack.c.l.b16 %v595
        %v635 = vunpack.c.l.b16 %v596
        %v636 = vunpack.c.l.b16 %v597
        %v637 = vunpack.c.l.b16 %v598
        %v638 = vunpack.c.l.b16 %v599
        %v639 = vunpack.c.l.b16 %v600
        %v640 = vunpack.c.l.b16 %v601
        %v641 = vunpack.c.l.b16 %v602
        %v642 = vunpack.c.l.b16 %v603
        %v643 = vunpack.c.l.b16 %v604
        %v644 = vunpack.c.l.b16 %v605
        %v645 = vunpack.c.l.b16 %v606
        %v646 = vunpack.c.l.b16 %v607
        %v647 = vunpack.c.l.b16 %v608
        %v648 = vpack.c.b16 %v633, %v632
        %v649 = vpack.c.b16 %v635, %v634
        %v650 = vpack.c.b16 %v637, %v636
        %v651 = vpack.c.b16 %v639, %v638
        %v652 = vpack.c.b16 %v641, %v640
        %v653 = vpack.c.b16 %v643, %v642
        %v654 = vpack.c.b16 %v645, %v644
        %v655 = vpack.c.b16 %v647, %v646
        %664 = vmatprep.subr.bf16.mxu0 0
        %665 = vmatpush1.bf16.msra.mxu0 %v655
        %666 = vmatprep.subr.bf16.mxu0 0
        %667 = vmatpush1.bf16.msra.mxu0 %v654
        %668 = vmatprep.subr.bf16.mxu0 0
        %669 = vmatpush1.bf16.msra.mxu0 %v653
        %670 = vmatprep.subr.bf16.mxu0 0
        %671 = vmatpush1.bf16.msra.mxu0 %v652
        %672 = vmatprep.subr.bf16.mxu0 0
        %673 = vmatpush1.bf16.msra.mxu0 %v651
        %674 = vmatprep.subr.bf16.mxu0 0
        %675 = vmatpush1.bf16.msra.mxu0 %v650
        %676 = vmatprep.subr.bf16.mxu0 0
        %677 = vmatpush1.bf16.msra.mxu0 %v649
        %678 = vmatprep.subr.bf16.mxu0 0
        %679 = vmatpush1.bf16.msra.mxu0 %v648
        %680 = vmatprep.subr.bf16.mxu0 0
        %681 = vmatpush2.bf16.msra.mxu0 0
        %682 = vmatprep.subr.bf16.mxu0 0
        %683 = vmatpush2.bf16.msra.mxu0 0
        %684 = vmatprep.subr.bf16.mxu0 0
        %685 = vmatpush2.bf16.msra.mxu0 0
        %686 = vmatprep.subr.bf16.mxu0 0
        %687 = vmatpush2.bf16.msra.mxu0 0
        %688 = vmatprep.subr.bf16.mxu0 0
        %689 = vmatpush2.bf16.msra.mxu0 0
        %690 = vmatprep.subr.bf16.mxu0 0
        %691 = vmatpush2.bf16.msra.mxu0 0
        %692 = vmatprep.subr.bf16.mxu0 0
        %693 = vmatpush2.bf16.msra.mxu0 0
        %694 = vmatprep.subr.bf16.mxu0 0
        %695 = vmatpush2.bf16.msra.mxu0 0
        %696 = vmatprep.mubr.bf16.mxu0 0
        %697 = vmatmul.mubr.bf16.gmra.mxu0 %v592
        %v698 = vpop.f32.mrf.mxu0
        %v699 = vadd.f32 %v614, %v698
        %v700 = vpop.f32.mrf.mxu0
        %v701 = vpop.f32.mrf.mxu0
        %v702 = vadd.f32 %v614, %v701
        %v703 = vpop.f32.mrf.mxu0
        %704 = vdwg.mxu0
        %705 = vst [vmem:[%s340] sm:$0xff] %v699
        %706 = vst [vmem:[%s340 + $0x8] sm:$0xff] %v702
        %s707 = sand.u32 %s186, 1
        %s708 = scalar_lea.sflag [#allocation4], %s707
        %s709 = sand.u32 %s186, 1
        %s710 = smul.addr %s709, 16
        %s711 = scalar_lea.vmem [#allocation10], %s710
        // Predicated region
        $region65: #{tpu_custom_call.1} parent=47 // pred_check
          %p712 = pneg %p196
        $region66: #{tpu_custom_call.1} parent=47 // pred_check_branch
          %714 = sbr.rel (%p712) target = $region68
        $region67: #{tpu_custom_call.1} parent=47 // pred_region
          %s715 = smul.u32 2, %s26
          %s717 = ssub.s32 256, 256
          %718 = vsyncadd %s708, %s717
          %s719 = smul.addr %s715, 128
          %s720 = scalar_lea.hbm %s7, %s719
          %s721 = sshll.u32 %s711, 4
          %s722 = int_to_ptr.vmem [resolvable:$true] %s721
          %727 = dma.vmem_to_hbm [thread:$0]  %s722, 256, %s720, %s708, 128, 128, 8
        $region68: #{tpu_custom_call.1} parent=47 // pred_fallthru
          _
      $region48: #{tpu_custom_call.1} parent=5 // pred_fallthru
        _
      %p728 = scmp.le.s32.totalorder 2, %s21
      // Predicated region
      $region69: #{tpu_custom_call.1} parent=5 // pred_check
        %p729 = pneg %p728
      $region70: #{tpu_custom_call.1} parent=5 // pred_check_branch
        %731 = sbr.rel (%p729) target = $region72
      $region71: #{tpu_custom_call.1} parent=5 // pred_region
        %s732 = ssub.s32 %s21, 2
        // Predicated region
        $region73: #{tpu_custom_call.1} parent=71 // pred_check
          %p733 = pneg %p202
        $region74: #{tpu_custom_call.1} parent=71 // pred_check_branch
          %735 = sbr.rel (%p733) target = $region76
        $region75: #{tpu_custom_call.1} parent=71 // pred_region
          %s736 = sand.u32 %s187, 1
          %s737 = scalar_lea.sflag [#allocation4], %s736
          %s738 = sand.u32 %s187, 1
          %s739 = smul.addr %s738, 16
          %s740 = scalar_lea.vmem [#allocation10], %s739
          %741 = dma.done %s737, 256
        $region76: #{tpu_custom_call.1} parent=71 // pred_fallthru
          _
      $region72: #{tpu_custom_call.1} parent=5 // pred_fallthru
        _
    $region6: #{tpu_custom_call.1} parent=1 // loop_footer
      %s25 = sadd.s32 1, %s21
    $region7: #{tpu_custom_call.1} parent=1 // loop_footer_branch
      %20 = sbr.rel target = $region3
    $region8: #{tpu_custom_call.1} parent=1 // loop_exit
      _
    %742 = vsyncpa [#allocation3], 1
    %s743 = scalar_lea.sflag [#allocation3], 1
    %744 = vsyncpa %s743, 1
    %745 = vsyncpa [#allocation6], 1
    %746 = vsyncpa [#allocation9], 1
    %747 = vsyncpa [#allocation4], 1
    %s748 = scalar_lea.sflag [#allocation4], 1
    %749 = vsyncpa %s748, 1

</llo_original>
